<compile_context>
chip_gen: v7x
topology: tpu7x:2x2x1
jax: 0.10.0
libtpu: 0.0.40
codegen_flags: <defaults>
</compile_context>

<pallas_src>
import math
from functools import partial

import jax
import jax.numpy as jnp
from jax.experimental import pallas as pl
from jax.experimental.pallas import tpu as pltpu

LANE = 128  # TPU lane width; hidden/class dims are zero-padded to multiples of this


def _round_up(n, m):
    return ((n + m - 1) // m) * m


def _pick_tile(n, candidates):
    """Largest candidate tile that divides n (n is a multiple of 128)."""
    for c in candidates:
        if c <= n and n % c == 0:
            return c
    return n


def _vmem_limit(tm, tk, d_in, d_out, out_bytes):
    """Conservative VMEM budget for the adjacency-layer kernels."""
    need = (2 * tm * tk * 2            # adj tiles (bf16, double-buffered)
            + 2 * tk * d_in * 2        # support tiles (bf16, double-buffered)
            + 2 * tm * d_out * out_bytes  # output tiles (double-buffered)
            + tm * d_in * 4            # f32 accumulator scratch
            + 2 * d_in * 4             # bias (resident)
            + 2 * d_in * d_out * 2     # fused weight (resident, upper bound)
            + (8 << 20))               # headroom for compiler scratch
    return int(min(max(need, 16 << 20), 48 << 20))


# ---------------------------------------------------------------------------
# Kernel 1: feature transform  support1 = x @ W1   (W1 tiny, kept resident)
# Emits bf16 so downstream MXU passes and DMAs move half the bytes.
# ---------------------------------------------------------------------------
def _feat_kernel(x_ref, w_ref, out_ref):
    x = x_ref[...].astype(jnp.bfloat16)
    w = w_ref[...].astype(jnp.bfloat16)
    out_ref[...] = jnp.dot(
        x, w, preferred_element_type=jnp.float32).astype(out_ref.dtype)


def _feature_matmul(x, w, tm):
    n, fin = x.shape
    d = w.shape[1]
    return pl.pallas_call(
        _feat_kernel,
        out_shape=jax.ShapeDtypeStruct((n, d), jnp.bfloat16),
        grid_spec=pltpu.PrefetchScalarGridSpec(
            num_scalar_prefetch=0,
            grid=(n // tm,),
            in_specs=[
                pl.BlockSpec((tm, fin), lambda i: (i, 0)),
                pl.BlockSpec((fin, d), lambda i: (0, 0)),
            ],
            out_specs=pl.BlockSpec((tm, d), lambda i: (i, 0)),
        ),
        compiler_params=pltpu.CompilerParams(
            dimension_semantics=("parallel",),
        ),
        cost_estimate=pl.CostEstimate(
            flops=int(2 * n * fin * d),
            transcendentals=0,
            bytes_accessed=int(n * fin * 4 + fin * d * 4 + n * d * 2),
        ),
    )(x, w)


# ---------------------------------------------------------------------------
# Kernel 2 (layer 1, fused):  support2 = relu(adj @ support1 + b1) @ W2
# h is never materialized in HBM.
# ---------------------------------------------------------------------------
def _adj_relu_proj_kernel(adj_ref, s_ref, b_ref, w_ref, out_ref, acc_ref):
    k = pl.program_id(1)

    @pl.when(k == 0)
    def _():
        acc_ref[...] = jnp.zeros_like(acc_ref)

    acc_ref[...] += jnp.dot(
        adj_ref[...], s_ref[...], preferred_element_type=jnp.float32)

    @pl.when(k == pl.num_programs(1) - 1)
    def _():
        # Padded hidden lanes are exactly 0 here (zero-padded W1/b1), so ReLU
        # keeps them 0 and the fused W2 matmul stays exact.
        h = jnp.maximum(acc_ref[...] + b_ref[...], 0.0)
        # TODO(synk): training-mode dropout on h would go here
        # (pltpu.prng_seed + pltpu.prng_random_bits); identity in eval mode.
        out_ref[...] = jnp.dot(
            h.astype(jnp.bfloat16), w_ref[...],
            preferred_element_type=jnp.float32).astype(out_ref.dtype)


def _layer1(adj_bf16, support1, b1, w2_bf16, *, tm, tk):
    n = adj_bf16.shape[0]
    d1 = support1.shape[1]
    d2 = w2_bf16.shape[1]
    return pl.pallas_call(
        _adj_relu_proj_kernel,
        out_shape=jax.ShapeDtypeStruct((n, d2), jnp.bfloat16),
        grid_spec=pltpu.PrefetchScalarGridSpec(
            num_scalar_prefetch=0,
            grid=(n // tm, n // tk),
            in_specs=[
                pl.BlockSpec((tm, tk), lambda i, k: (i, k)),   # adj tile (bf16)
                pl.BlockSpec((tk, d1), lambda i, k: (k, 0)),   # support1 slab (bf16)
                pl.BlockSpec((1, d1), lambda i, k: (0, 0)),    # b1 (resident)
                pl.BlockSpec((d1, d2), lambda i, k: (0, 0)),   # W2 (resident)
            ],
            out_specs=pl.BlockSpec((tm, d2), lambda i, k: (i, 0)),
            scratch_shapes=[pltpu.VMEM((tm, d1), jnp.float32)],
        ),
        compiler_params=pltpu.CompilerParams(
            dimension_semantics=("parallel", "arbitrary"),
            vmem_limit_bytes=_vmem_limit(tm, tk, d1, d2, 2),
        ),
        cost_estimate=pl.CostEstimate(
            flops=int(2 * n * n * d1 + 2 * n * d1 * d2),
            transcendentals=0,
            bytes_accessed=int(n * n * 2 + n * d1 * 2 + d1 * d2 * 2 + n * d2 * 2),
        ),
    )(adj_bf16, support1, b1, w2_bf16)


# ---------------------------------------------------------------------------
# Kernel 3 (layer 2):  out = log_softmax(adj @ support2 + b2)  over valid lanes
# ---------------------------------------------------------------------------
def _adj_logsoftmax_kernel(adj_ref, s_ref, b_ref, out_ref, acc_ref, *, valid_cols):
    k = pl.program_id(1)

    @pl.when(k == 0)
    def _():
        acc_ref[...] = jnp.zeros_like(acc_ref)

    acc_ref[...] += jnp.dot(
        adj_ref[...], s_ref[...], preferred_element_type=jnp.float32)

    @pl.when(k == pl.num_programs(1) - 1)
    def _():
        z = acc_ref[...] + b_ref[...]
        col = jax.lax.broadcasted_iota(jnp.int32, z.shape, 1)
        zm = jnp.where(col < valid_cols, z, jnp.float32(-1e30))
        m = jnp.max(zm, axis=1, keepdims=True)
        s = zm - m
        lse = jnp.log(jnp.sum(jnp.exp(s), axis=1, keepdims=True))
        out_ref[...] = s - lse


def _layer2(adj_bf16, support2, b2, *, nclass, tm, tk):
    n = adj_bf16.shape[0]
    d2 = support2.shape[1]
    return pl.pallas_call(
        partial(_adj_logsoftmax_kernel, valid_cols=nclass),
        out_shape=jax.ShapeDtypeStruct((n, d2), jnp.float32),
        grid_spec=pltpu.PrefetchScalarGridSpec(
            num_scalar_prefetch=0,
            grid=(n // tm, n // tk),
            in_specs=[
                pl.BlockSpec((tm, tk), lambda i, k: (i, k)),   # adj tile (bf16)
                pl.BlockSpec((tk, d2), lambda i, k: (k, 0)),   # support2 slab (bf16)
                pl.BlockSpec((1, d2), lambda i, k: (0, 0)),    # b2 (resident)
            ],
            out_specs=pl.BlockSpec((tm, d2), lambda i, k: (i, 0)),
            scratch_shapes=[pltpu.VMEM((tm, d2), jnp.float32)],
        ),
        compiler_params=pltpu.CompilerParams(
            dimension_semantics=("parallel", "arbitrary"),
            vmem_limit_bytes=_vmem_limit(tm, tk, d2, d2, 4),
        ),
        cost_estimate=pl.CostEstimate(
            flops=int(2 * n * n * d2),
            transcendentals=int(n * d2),
            bytes_accessed=int(n * n * 2 + n * d2 * 2 + d2 * 4 + n * d2 * 4),
        ),
    )(adj_bf16, support2, b2)


# ---------------------------------------------------------------------------
# Full GCN forward
# ---------------------------------------------------------------------------
def gcn_forward(x, adj, w1, b1, w2, b2):
    n, nfeat = x.shape
    nhid = w1.shape[1]
    nclass = w2.shape[1]

    d1 = _round_up(max(nhid, 1), LANE)    # padded hidden width (lane-dense)
    d2 = _round_up(max(nclass, 1), LANE)  # padded class width (lane-dense)

    n_pad = _round_up(n, 128)
    tm = _pick_tile(n_pad, (512, 256, 128))
    tk = _pick_tile(n_pad, (1024, 512, 256, 128))

    # Zero-pad nodes; cast the big adjacency operand to bf16 once.
    x_p = jnp.zeros((n_pad, nfeat), jnp.float32).at[:n, :].set(x)
    adj_p = jnp.zeros((n_pad, n_pad), jnp.float32).at[:n, :n].set(adj)
    adj_bf16 = adj_p.astype(jnp.bfloat16)

    # Zero-pad weights/biases to 128-lane widths (exact through ReLU / matmul).
    w1_p = jnp.zeros((nfeat, d1), jnp.float32).at[:, :nhid].set(w1)
    b1_p = jnp.zeros((1, d1), jnp.float32).at[:, :nhid].set(b1)
    w2_p = jnp.zeros((d1, d2), jnp.float32).at[:nhid, :nclass].set(w2)
    b2_p = jnp.zeros((1, d2), jnp.float32).at[:, :nclass].set(b2)
    w2_bf16 = w2_p.astype(jnp.bfloat16)

    # support1 = x @ W1                                  (bf16, lane-dense)
    support1 = _feature_matmul(x_p, w1_p, tm)

    # support2 = relu(adj @ support1 + b1) @ W2          (fused; h stays on-chip)
    # F.dropout(h, p, training=False) is the identity in eval mode.
    support2 = _layer1(adj_bf16, support1, b1_p, w2_bf16, tm=tm, tk=tk)

    # out = log_softmax(adj @ support2 + b2, dim=1)
    out_p = _layer2(adj_bf16, support2, b2_p, nclass=nclass, tm=tm, tk=tk)

    return out_p[:n, :nclass]


def init_gcn_params(key, nfeat, nhid, nclass):
    """uniform(-stdv, stdv) with stdv = 1/sqrt(out_features), like reset_parameters."""
    k1, k2, k3, k4 = jax.random.split(key, 4)
    stdv1 = 1.0 / math.sqrt(nhid)
    stdv2 = 1.0 / math.sqrt(nclass)
    w1 = jax.random.uniform(k1, (nfeat, nhid), jnp.float32, -stdv1, stdv1)
    b1 = jax.random.uniform(k2, (1, nhid), jnp.float32, -stdv1, stdv1)
    w2 = jax.random.uniform(k3, (nhid, nclass), jnp.float32, -stdv2, stdv2)
    b2 = jax.random.uniform(k4, (1, nclass), jnp.float32, -stdv2, stdv2)
    return w1, b1, w2, b2


if __name__ == "__main__":
    # Small shapes consistent with the module: N nodes, nfeat -> nhid -> nclass.
    # N=300 is deliberately not a multiple of 128 to exercise node padding and
    # a multi-tile (3x3) grid with the k-axis accumulator.
    N, nfeat, nhid, nclass = 300, 16, 32, 8

    key = jax.random.PRNGKey(0)
    kx, kadj, kparams = jax.random.split(key, 3)

    x = jax.random.normal(kx, (N, nfeat), dtype=jnp.float32)

    # Symmetric, row-normalized adjacency with self-loops (typical GCN input).
    a = (jax.random.uniform(kadj, (N, N)) > 0.9).astype(jnp.float32)
    a = jnp.maximum(a, a.T) + jnp.eye(N, dtype=jnp.float32)
    adj = a / jnp.sum(a, axis=1, keepdims=True)

    w1, b1, w2, b2 = init_gcn_params(kparams, nfeat, nhid, nclass)

    gcn = jax.jit(gcn_forward)
    out = jax.block_until_ready(gcn(x, adj, w1, b1, w2, b2))

    # Pure-JAX f32 reference (kernel feeds the MXU bf16 inputs with f32
    # accumulation, so compare with a relaxed tolerance).
    h_ref = jnp.maximum(adj @ (x @ w1) + b1, 0.0)
    z_ref = adj @ (h_ref @ w2) + b2
    ref = jax.nn.log_softmax(z_ref, axis=1)

    assert out.shape == (N, nclass)
    err = float(jnp.max(jnp.abs(out - ref)))
    assert err < 5e-2, f"mismatch vs JAX reference (max |err| = {err})"

    print("KERNEL_OK")
</pallas_src>

<mosaic_0001>
module attributes {stable_mosaic.version = 11 : i64} {
  func.func @_feat_kernel(%arg0: i32, %arg1: memref<128x16xf32, #tpu.memory_space<vmem>>, %arg2: memref<16x128xf32, #tpu.memory_space<vmem>>, %arg3: memref<128x128xbf16, #tpu.memory_space<vmem>>) attributes {dimension_semantics = [#tpu.dimension_semantics<parallel>], iteration_bounds = array<i64: 3>, scalar_prefetch = 0 : i64, scratch_operands = 0 : i64, tpu.core_type = #tpu.core_type<tc>, window_params = [{transform_indices = @transform_0, window_bounds = array<i64: 128, 16>}, {pipeline_mode = #tpu.pipeline_mode<synchronous>, transform_indices = @transform_1, window_bounds = array<i64: 16, 128>}, {transform_indices = @transform_2, window_bounds = array<i64: 128, 128>}]} {
    %c0 = arith.constant 0 : index
    %c0_0 = arith.constant 0 : index
    %0 = vector.load %arg1[%c0, %c0_0] : memref<128x16xf32, #tpu.memory_space<vmem>>, vector<128x16xf32>
    %1 = arith.truncf %0 : vector<128x16xf32> to vector<128x16xbf16>
    %c0_1 = arith.constant 0 : index
    %c0_2 = arith.constant 0 : index
    %2 = vector.load %arg2[%c0_1, %c0_2] : memref<16x128xf32, #tpu.memory_space<vmem>>, vector<16x128xf32>
    %3 = arith.truncf %2 : vector<16x128xf32> to vector<16x128xbf16>
    %cst = arith.constant dense<0.000000e+00> : vector<128x128xf32>
    %4 = tpu.matmul %1, %3, %cst {dimension_numbers = #tpu.dot_dimension_numbers<[1], [0], [0], [1], [0, 0, 1, 1], [], []>} : vector<128x16xbf16>, vector<16x128xbf16>, vector<128x128xf32> -> vector<128x128xf32>
    %5 = arith.truncf %4 : vector<128x128xf32> to vector<128x128xbf16>
    %c0_3 = arith.constant 0 : index
    %c0_4 = arith.constant 0 : index
    %6 = vector.load %arg3[%c0_3, %c0_4] : memref<128x128xbf16, #tpu.memory_space<vmem>>, vector<128x128xbf16>
    tpu.vector_store %arg3[%c0_3, %c0_4], %5 {strides = array<i32>} : memref<128x128xbf16, #tpu.memory_space<vmem>>, vector<128x128xbf16>,
    return
  }
  func.func @transform_0(%arg0: i32) -> (i32, i32) {
    %c0_i32 = arith.constant 0 : i32
    %c0_i32_0 = arith.constant 0 : i32
    return %arg0, %c0_i32 : i32, i32
  }
  func.func @transform_1(%arg0: i32) -> (i32, i32) {
    %c0_i32 = arith.constant 0 : i32
    %c0_i32_0 = arith.constant 0 : i32
    %c0_i32_1 = arith.constant 0 : i32
    return %c0_i32, %c0_i32_0 : i32, i32
  }
  func.func @transform_2(%arg0: i32) -> (i32, i32) {
    %c0_i32 = arith.constant 0 : i32
    %c0_i32_0 = arith.constant 0 : i32
    return %arg0, %c0_i32 : i32, i32
  }
}

module attributes {stable_mosaic.version = 11 : i64} {
  func.func @_adj_relu_proj_kernel(%arg0: i32, %arg1: i32, %arg2: memref<128x128xbf16, #tpu.memory_space<vmem>>, %arg3: memref<128x128xbf16, #tpu.memory_space<vmem>>, %arg4: memref<1x128xf32, #tpu.memory_space<vmem>>, %arg5: memref<128x128xbf16, #tpu.memory_space<vmem>>, %arg6: memref<128x128xbf16, #tpu.memory_space<vmem>>, %arg7: memref<128x128xf32, #tpu.memory_space<vmem>>) attributes {dimension_semantics = [#tpu.dimension_semantics<parallel>, #tpu.dimension_semantics<arbitrary>], iteration_bounds = array<i64: 3, 3>, scalar_prefetch = 0 : i64, scratch_operands = 1 : i64, tpu.core_type = #tpu.core_type<tc>, window_params = [{transform_indices = @transform_0, window_bounds = array<i64: 128, 128>}, {transform_indices = @transform_1, window_bounds = array<i64: 128, 128>}, {pipeline_mode = #tpu.pipeline_mode<synchronous>, transform_indices = @transform_2, window_bounds = array<i64: 1, 128>}, {pipeline_mode = #tpu.pipeline_mode<synchronous>, transform_indices = @transform_3, window_bounds = array<i64: 128, 128>}, {transform_indices = @transform_4, window_bounds = array<i64: 128, 128>}]} {
    %c0_i32 = arith.constant 0 : i32
    %0 = arith.cmpi eq, %arg1, %c0_i32 : i32
    %1 = arith.extui %0 : i1 to i32
    %c0_i32_0 = arith.constant 0 : i32
    %2 = arith.cmpi ne, %1, %c0_i32_0 : i32
    scf.if %2 {
      %cst_9 = arith.constant 0.000000e+00 : f32
      %12 = vector.broadcast %cst_9 : f32 to vector<128x128xf32>
      %c0_10 = arith.constant 0 : index
      %c0_11 = arith.constant 0 : index
      %13 = vector.load %arg7[%c0_10, %c0_11] : memref<128x128xf32, #tpu.memory_space<vmem>>, vector<128x128xf32>
      tpu.vector_store %arg7[%c0_10, %c0_11], %12 {strides = array<i32>} : memref<128x128xf32, #tpu.memory_space<vmem>>, vector<128x128xf32>,
    } else {
    }
    %c0 = arith.constant 0 : index
    %c0_1 = arith.constant 0 : index
    %3 = vector.load %arg7[%c0, %c0_1] : memref<128x128xf32, #tpu.memory_space<vmem>>, vector<128x128xf32>
    %c0_2 = arith.constant 0 : index
    %c0_3 = arith.constant 0 : index
    %4 = vector.load %arg2[%c0_2, %c0_3] : memref<128x128xbf16, #tpu.memory_space<vmem>>, vector<128x128xbf16>
    %c0_4 = arith.constant 0 : index
    %c0_5 = arith.constant 0 : index
    %5 = vector.load %arg3[%c0_4, %c0_5] : memref<128x128xbf16, #tpu.memory_space<vmem>>, vector<128x128xbf16>
    %cst = arith.constant dense<0.000000e+00> : vector<128x128xf32>
    %6 = tpu.matmul %4, %5, %cst {dimension_numbers = #tpu.dot_dimension_numbers<[1], [0], [0], [1], [0, 0, 1, 1], [], []>} : vector<128x128xbf16>, vector<128x128xbf16>, vector<128x128xf32> -> vector<128x128xf32>
    %7 = arith.addf %3, %6 : vector<128x128xf32>
    %c0_6 = arith.constant 0 : index
    %c0_7 = arith.constant 0 : index
    %8 = vector.load %arg7[%c0_6, %c0_7] : memref<128x128xf32, #tpu.memory_space<vmem>>, vector<128x128xf32>
    tpu.vector_store %arg7[%c0_6, %c0_7], %7 {strides = array<i32>} : memref<128x128xf32, #tpu.memory_space<vmem>>, vector<128x128xf32>,
    %c2_i32 = arith.constant 2 : i32
    %9 = arith.cmpi eq, %arg1, %c2_i32 : i32
    %10 = arith.extui %9 : i1 to i32
    %c0_i32_8 = arith.constant 0 : i32
    %11 = arith.cmpi ne, %10, %c0_i32_8 : i32
    scf.if %11 {
      %c0_9 = arith.constant 0 : index
      %c0_10 = arith.constant 0 : index
      %12 = vector.load %arg7[%c0_9, %c0_10] : memref<128x128xf32, #tpu.memory_space<vmem>>, vector<128x128xf32>
      %c0_11 = arith.constant 0 : index
      %c0_12 = arith.constant 0 : index
      %13 = vector.load %arg4[%c0_11, %c0_12] : memref<1x128xf32, #tpu.memory_space<vmem>>, vector<1x128xf32>
      %14 = vector.broadcast %13 : vector<1x128xf32> to vector<128x128xf32>
      %15 = arith.addf %12, %14 : vector<128x128xf32>
      %cst_13 = arith.constant 0.000000e+00 : f32
      %16 = vector.broadcast %cst_13 : f32 to vector<128x128xf32>
      %17 = arith.maximumf %15, %16 : vector<128x128xf32>
      %18 = arith.truncf %17 : vector<128x128xf32> to vector<128x128xbf16>
      %c0_14 = arith.constant 0 : index
      %c0_15 = arith.constant 0 : index
      %19 = vector.load %arg5[%c0_14, %c0_15] : memref<128x128xbf16, #tpu.memory_space<vmem>>, vector<128x128xbf16>
      %cst_16 = arith.constant dense<0.000000e+00> : vector<128x128xf32>
      %20 = tpu.matmul %18, %19, %cst_16 {dimension_numbers = #tpu.dot_dimension_numbers<[1], [0], [0], [1], [0, 0, 1, 1], [], []>} : vector<128x128xbf16>, vector<128x128xbf16>, vector<128x128xf32> -> vector<128x128xf32>
      %21 = arith.truncf %20 : vector<128x128xf32> to vector<128x128xbf16>
      %c0_17 = arith.constant 0 : index
      %c0_18 = arith.constant 0 : index
      %22 = vector.load %arg6[%c0_17, %c0_18] : memref<128x128xbf16, #tpu.memory_space<vmem>>, vector<128x128xbf16>
      tpu.vector_store %arg6[%c0_17, %c0_18], %21 {strides = array<i32>} : memref<128x128xbf16, #tpu.memory_space<vmem>>, vector<128x128xbf16>,
    } else {
    }
    return
  }
  func.func @transform_0(%arg0: i32, %arg1: i32) -> (i32, i32) {
    %c0_i32 = arith.constant 0 : i32
    return %arg0, %arg1 : i32, i32
  }
  func.func @transform_1(%arg0: i32, %arg1: i32) -> (i32, i32) {
    %c0_i32 = arith.constant 0 : i32
    %c0_i32_0 = arith.constant 0 : i32
    return %arg1, %c0_i32 : i32, i32
  }
  func.func @transform_2(%arg0: i32, %arg1: i32) -> (i32, i32) {
    %c0_i32 = arith.constant 0 : i32
    %c0_i32_0 = arith.constant 0 : i32
    %c0_i32_1 = arith.constant 0 : i32
    return %c0_i32, %c0_i32_0 : i32, i32
  }
  func.func @transform_3(%arg0: i32, %arg1: i32) -> (i32, i32) {
    %c0_i32 = arith.constant 0 : i32
    %c0_i32_0 = arith.constant 0 : i32
    %c0_i32_1 = arith.constant 0 : i32
    return %c0_i32, %c0_i32_0 : i32, i32
  }
  func.func @transform_4(%arg0: i32, %arg1: i32) -> (i32, i32) {
    %c0_i32 = arith.constant 0 : i32
    %c0_i32_0 = arith.constant 0 : i32
    return %arg0, %c0_i32 : i32, i32
  }
}

module attributes {stable_mosaic.version = 11 : i64} {
  func.func @_adj_logsoftmax_kernel(%arg0: i32, %arg1: i32, %arg2: memref<128x128xbf16, #tpu.memory_space<vmem>>, %arg3: memref<128x128xbf16, #tpu.memory_space<vmem>>, %arg4: memref<1x128xf32, #tpu.memory_space<vmem>>, %arg5: memref<128x128xf32, #tpu.memory_space<vmem>>, %arg6: memref<128x128xf32, #tpu.memory_space<vmem>>) attributes {dimension_semantics = [#tpu.dimension_semantics<parallel>, #tpu.dimension_semantics<arbitrary>], iteration_bounds = array<i64: 3, 3>, scalar_prefetch = 0 : i64, scratch_operands = 1 : i64, tpu.core_type = #tpu.core_type<tc>, window_params = [{transform_indices = @transform_0, window_bounds = array<i64: 128, 128>}, {transform_indices = @transform_1, window_bounds = array<i64: 128, 128>}, {pipeline_mode = #tpu.pipeline_mode<synchronous>, transform_indices = @transform_2, window_bounds = array<i64: 1, 128>}, {transform_indices = @transform_3, window_bounds = array<i64: 128, 128>}]} {
    %c0_i32 = arith.constant 0 : i32
    %0 = arith.cmpi eq, %arg1, %c0_i32 : i32
    %1 = arith.extui %0 : i1 to i32
    %c0_i32_0 = arith.constant 0 : i32
    %2 = arith.cmpi ne, %1, %c0_i32_0 : i32
    scf.if %2 {
      %cst_9 = arith.constant 0.000000e+00 : f32
      %12 = vector.broadcast %cst_9 : f32 to vector<128x128xf32>
      %c0_10 = arith.constant 0 : index
      %c0_11 = arith.constant 0 : index
      %13 = vector.load %arg6[%c0_10, %c0_11] : memref<128x128xf32, #tpu.memory_space<vmem>>, vector<128x128xf32>
      tpu.vector_store %arg6[%c0_10, %c0_11], %12 {strides = array<i32>} : memref<128x128xf32, #tpu.memory_space<vmem>>, vector<128x128xf32>,
    } else {
    }
    %c0 = arith.constant 0 : index
    %c0_1 = arith.constant 0 : index
    %3 = vector.load %arg6[%c0, %c0_1] : memref<128x128xf32, #tpu.memory_space<vmem>>, vector<128x128xf32>
    %c0_2 = arith.constant 0 : index
    %c0_3 = arith.constant 0 : index
    %4 = vector.load %arg2[%c0_2, %c0_3] : memref<128x128xbf16, #tpu.memory_space<vmem>>, vector<128x128xbf16>
    %c0_4 = arith.constant 0 : index
    %c0_5 = arith.constant 0 : index
    %5 = vector.load %arg3[%c0_4, %c0_5] : memref<128x128xbf16, #tpu.memory_space<vmem>>, vector<128x128xbf16>
    %cst = arith.constant dense<0.000000e+00> : vector<128x128xf32>
    %6 = tpu.matmul %4, %5, %cst {dimension_numbers = #tpu.dot_dimension_numbers<[1], [0], [0], [1], [0, 0, 1, 1], [], []>} : vector<128x128xbf16>, vector<128x128xbf16>, vector<128x128xf32> -> vector<128x128xf32>
    %7 = arith.addf %3, %6 : vector<128x128xf32>
    %c0_6 = arith.constant 0 : index
    %c0_7 = arith.constant 0 : index
    %8 = vector.load %arg6[%c0_6, %c0_7] : memref<128x128xf32, #tpu.memory_space<vmem>>, vector<128x128xf32>
    tpu.vector_store %arg6[%c0_6, %c0_7], %7 {strides = array<i32>} : memref<128x128xf32, #tpu.memory_space<vmem>>, vector<128x128xf32>,
    %c2_i32 = arith.constant 2 : i32
    %9 = arith.cmpi eq, %arg1, %c2_i32 : i32
    %10 = arith.extui %9 : i1 to i32
    %c0_i32_8 = arith.constant 0 : i32
    %11 = arith.cmpi ne, %10, %c0_i32_8 : i32
    scf.if %11 {
      %c0_9 = arith.constant 0 : index
      %c0_10 = arith.constant 0 : index
      %12 = vector.load %arg6[%c0_9, %c0_10] : memref<128x128xf32, #tpu.memory_space<vmem>>, vector<128x128xf32>
      %c0_11 = arith.constant 0 : index
      %c0_12 = arith.constant 0 : index
      %13 = vector.load %arg4[%c0_11, %c0_12] : memref<1x128xf32, #tpu.memory_space<vmem>>, vector<1x128xf32>
      %14 = vector.broadcast %13 : vector<1x128xf32> to vector<128x128xf32>
      %15 = arith.addf %12, %14 : vector<128x128xf32>
      %16 = tpu.iota {dimensions = array<i32: 1>} : vector<128x128xi32>
      %c8_i32 = arith.constant 8 : i32
      %17 = vector.broadcast %c8_i32 : i32 to vector<128x128xi32>
      %18 = arith.cmpi slt, %16, %17 : vector<128x128xi32>
      %cst_13 = arith.constant -1.000000e+30 : f32
      %19 = vector.broadcast %cst_13 : f32 to vector<128x128xf32>
      %20 = arith.select %18, %15, %19 : vector<128x128xi1>, vector<128x128xf32>
      %cst_14 = arith.constant dense<0xFF800000> : vector<128xf32>
      %21 = vector.multi_reduction <maximumf>, %20, %cst_14 [1] : vector<128x128xf32> to vector<128xf32>
      %22 = vector.shape_cast %21 : vector<128xf32> to vector<128x1xf32>
      %23 = vector.broadcast %22 : vector<128x1xf32> to vector<128x128xf32>
      %24 = arith.subf %20, %23 : vector<128x128xf32>
      %25 = math.exp %24 : vector<128x128xf32>
      %cst_15 = arith.constant dense<0.000000e+00> : vector<128xf32>
      %26 = vector.multi_reduction <add>, %25, %cst_15 [1] : vector<128x128xf32> to vector<128xf32>
      %27 = vector.shape_cast %26 : vector<128xf32> to vector<128x1xf32>
      %28 = math.log %27 : vector<128x1xf32>
      %29 = vector.broadcast %28 : vector<128x1xf32> to vector<128x128xf32>
      %30 = arith.subf %24, %29 : vector<128x128xf32>
      %c0_16 = arith.constant 0 : index
      %c0_17 = arith.constant 0 : index
      %31 = vector.load %arg5[%c0_16, %c0_17] : memref<128x128xf32, #tpu.memory_space<vmem>>, vector<128x128xf32>
      tpu.vector_store %arg5[%c0_16, %c0_17], %30 {strides = array<i32>} : memref<128x128xf32, #tpu.memory_space<vmem>>, vector<128x128xf32>,
    } else {
    }
    return
  }
  func.func @transform_0(%arg0: i32, %arg1: i32) -> (i32, i32) {
    %c0_i32 = arith.constant 0 : i32
    return %arg0, %arg1 : i32, i32
  }
  func.func @transform_1(%arg0: i32, %arg1: i32) -> (i32, i32) {
    %c0_i32 = arith.constant 0 : i32
    %c0_i32_0 = arith.constant 0 : i32
    return %arg1, %c0_i32 : i32, i32
  }
  func.func @transform_2(%arg0: i32, %arg1: i32) -> (i32, i32) {
    %c0_i32 = arith.constant 0 : i32
    %c0_i32_0 = arith.constant 0 : i32
    %c0_i32_1 = arith.constant 0 : i32
    return %c0_i32, %c0_i32_0 : i32, i32
  }
  func.func @transform_3(%arg0: i32, %arg1: i32) -> (i32, i32) {
    %c0_i32 = arith.constant 0 : i32
    %c0_i32_0 = arith.constant 0 : i32
    return %arg0, %c0_i32 : i32, i32
  }
}

</mosaic_0001>

<llo_original>
// kernel: gcn_forward.3
$region0: #{gcn_forward.3}
  #allocation0 [shape = 'u32[]', space=smem, size = 0x4, offset = 0x4, fixed_abs, tag = 'smem constant byte address 0x4 - core index']
  #allocation1 [shape = 'u32[144,128]{1,0:T(1,128)}', space=vmem, size = 0x12000, scoped, tag = 'internal scratch']
  %s0 = inlined_call_operand.vmem [shape: f32[384,16], index: 0, kind: input, shape index: {}]
  %s1 = inlined_call_operand.vmem [shape: f32[16,128], index: 1, kind: input, shape index: {}]
  %s2 = inlined_call_operand.vmem [shape: bf16[384,128], index: 2, kind: output, shape index: {}]
  %s3 = sld [smem:[#allocation0]]
  $region41: #{gcn_forward.3} parent=0
    _
  %s5 = ssub.s32 1, %s3
  %s6 = scalar_select 0, %s5, %s3
  loop: start=0, step=1, limit=5
  $region2: #{gcn_forward.3} parent=0 // loop_pre_header
    _
  $region3: #{gcn_forward.3} parent=0 // loop_header
    %s8 = sphi 0, %s12
    %p9 = scmp.ge.s32.totalorder %s8, 5
    %s18 = sphi 0, %s20
    %s21 = sphi 0, %s18
    %s22 = sphi 0, %s21
    %s38 = sphi 0, %s22
    %s42 = sphi 0, %s42
    %s44 = sphi 0, %s42
    %s45 = sphi 0, %s44
    %s59 = sphi 0, %s45
    %s65 = sphi 0, %s67
    %s68 = sphi 0, %s65
    %s69 = sphi 0, %s68
    %s85 = sphi 0, %s69
  $region4: #{gcn_forward.3} parent=0 // loop_header_branch
    %11 = sbr.rel (%p9) target = $region8
  $region5: #{gcn_forward.3} parent=0 // loop_body
    %s13 = ssub.s32 %s8, 1
    %s14 = ssub.s32 %s8, 2
    %s15 = sadd.s32 %s8, 1
    %s16 = ssub.s32 %s8, %s15
    %p17 = scmp.eq.s32.totalorder %s16, 0
    %s19 = sadd.s32 %s18, 1
    %s20 = scalar_select %p17, %s18, %s19
    %p23 = pneg %p17
    %p24 = scmp.eq.s32.totalorder %s8, 2
    %p25 = por %p23, %p24
    %p26 = scmp.ne.s32.totalorder %s18, %s21
    %p27 = scmp.eq.s32.totalorder %s8, 0
    %p28 = por %p26, %p27
    %p29 = scmp.ne.s32.totalorder %s18, %s21
    %p30 = scmp.eq.s32.totalorder %s13, 2
    %p31 = por %p29, %p30
    %p32 = scmp.ne.s32.totalorder %s21, %s22
    %p33 = scmp.eq.s32.totalorder %s13, 0
    %p34 = por %p32, %p33
    %p35 = scmp.ne.s32.totalorder %s21, %s22
    %p36 = scmp.eq.s32.totalorder %s14, 2
    %p37 = por %p35, %p36
    %p39 = scmp.ne.s32.totalorder %s22, %s38
    %p40 = scmp.eq.s32.totalorder %s14, 0
    %p41 = por %p39, %p40
    %s43 = sadd.s32 %s42, 1
    %p46 = scmp.eq.s32.totalorder %s8, 2
    %p47 = scmp.ne.s32.totalorder %s42, %s44
    %p48 = scmp.eq.s32.totalorder %s8, 0
    %p49 = por %p47, %p48
    %p50 = scmp.ne.s32.totalorder %s42, %s44
    %p51 = scmp.eq.s32.totalorder %s13, 2
    %p52 = por %p50, %p51
    %p53 = scmp.ne.s32.totalorder %s44, %s45
    %p54 = scmp.eq.s32.totalorder %s13, 0
    %p55 = por %p53, %p54
    %p56 = scmp.ne.s32.totalorder %s44, %s45
    %p57 = scmp.eq.s32.totalorder %s14, 2
    %p58 = por %p56, %p57
    %p60 = scmp.ne.s32.totalorder %s45, %s59
    %p61 = scmp.eq.s32.totalorder %s14, 0
    %p62 = por %p60, %p61
    %s63 = ssub.s32 %s8, %s15
    %p64 = scmp.eq.s32.totalorder %s63, 0
    %s66 = sadd.s32 %s65, 1
    %s67 = scalar_select %p64, %s65, %s66
    %p70 = pneg %p64
    %p71 = scmp.eq.s32.totalorder %s8, 2
    %p72 = por %p70, %p71
    %p73 = scmp.ne.s32.totalorder %s65, %s68
    %p74 = scmp.eq.s32.totalorder %s8, 0
    %p75 = por %p73, %p74
    %p76 = scmp.ne.s32.totalorder %s65, %s68
    %p77 = scmp.eq.s32.totalorder %s13, 2
    %p78 = por %p76, %p77
    %p79 = scmp.ne.s32.totalorder %s68, %s69
    %p80 = scmp.eq.s32.totalorder %s13, 0
    %p81 = por %p79, %p80
    %p82 = scmp.ne.s32.totalorder %s68, %s69
    %p83 = scmp.eq.s32.totalorder %s14, 2
    %p84 = por %p82, %p83
    %p86 = scmp.ne.s32.totalorder %s69, %s85
    %p87 = scmp.eq.s32.totalorder %s14, 0
    %p88 = por %p86, %p87
    %p89 = scmp.le.s32.totalorder 1, %s8
    %p90 = scmp.lt.s32.totalorder %s8, 4
    %p91 = pnand %p89, %p90
    %p92 = pneg %p91
    // Predicated region
    $region9: #{gcn_forward.3} parent=5 // pred_check
      _
    $region10: #{gcn_forward.3} parent=5 // pred_check_branch
      %94 = sbr.rel (%p91) target = $region12
    $region11: #{gcn_forward.3} parent=5 // pred_region
      %s95 = ssub.s32 %s8, 1
      // Predicated region
      $region13: #{gcn_forward.3} parent=11 // pred_check
        %p96 = pneg %p55
      $region14: #{gcn_forward.3} parent=11 // pred_check_branch
        %98 = sbr.rel (%p96) target = $region16
      $region15: #{gcn_forward.3} parent=11 // pred_region
        _
      $region16: #{gcn_forward.3} parent=11 // pred_fallthru
        _
    $region12: #{gcn_forward.3} parent=5 // pred_fallthru
      _
    %p99 = scmp.lt.s32.totalorder %s8, 3
    // Predicated region
    $region17: #{gcn_forward.3} parent=5 // pred_check
      %p100 = pneg %p99
    $region18: #{gcn_forward.3} parent=5 // pred_check_branch
      %102 = sbr.rel (%p100) target = $region20
    $region19: #{gcn_forward.3} parent=5 // pred_region
      // Predicated region
      $region21: #{gcn_forward.3} parent=19 // pred_check
        %p103 = pneg %p28
      $region22: #{gcn_forward.3} parent=19 // pred_check_branch
        %105 = sbr.rel (%p103) target = $region24
      $region23: #{gcn_forward.3} parent=19 // pred_region
        %s106 = smul.u32 16, %s8
        %p107 = scmp.lt.s32.totalorder %s106, 47
        %s108 = scalar_select %p107, %s106, 47
        %s109 = smul.addr %s108, 8
        %s110 = scalar_lea.vmem %s0, %s109
        %s111 = smul.u32 16, %s8
      $region24: #{gcn_forward.3} parent=19 // pred_fallthru
        _
    $region20: #{gcn_forward.3} parent=5 // pred_fallthru
      _
    %p112 = scmp.le.s32.totalorder 1, %s8
    %p113 = scmp.lt.s32.totalorder %s8, 4
    %p114 = pnand %p112, %p113
    %p115 = pneg %p114
    // Predicated region
    $region25: #{gcn_forward.3} parent=5 // pred_check
      _
    $region26: #{gcn_forward.3} parent=5 // pred_check_branch
      %117 = sbr.rel (%p114) target = $region28
    $region27: #{gcn_forward.3} parent=5 // pred_region
      %s118 = ssub.s32 %s8, 1
      %s119 = smul.u32 16, %s13
      %p120 = scmp.lt.s32.totalorder %s119, 47
      %s121 = scalar_select %p120, %s119, 47
      %s122 = smul.addr %s121, 8
      %s123 = scalar_lea.vmem %s0, %s122
      %p124 = pneg %p34
      %p125 = pneg %p31
      %p126 = pneg %p55
      %p127 = pneg %p52
      %p128 = pneg %p81
      %p129 = pneg %p78
      %s130 = smul.u32 16, %s13
      %p131 = scmp.lt.s32.totalorder %s130, 47
      %s132 = scalar_select %p131, %s130, 47
      %s133 = smul.addr %s132, 4
      %s134 = scalar_lea.vmem %s2, %s133
      %s135 = smul.u32 16, %s13
      %p136 = scmp.lt.s32.totalorder %s135, 47
      %s137 = scalar_select %p136, %s135, 47
      %s138 = smul.addr %s137, 8
      %s139 = scalar_lea.vmem %s0, %s138
      %s140 = smul.u32 16, %s13
      %s141 = smul.u32 16, %s13
      %p142 = scmp.lt.s32.totalorder %s141, 47
      %s143 = scalar_select %p142, %s141, 47
      %s144 = smul.addr %s143, 4
      %s145 = scalar_lea.vmem %s2, %s144
      %s146 = smul.u32 16, %s13
      %v148 = vld [vmem:[%s139] sm:$0xff]
      %v149 = vld [vmem:[%s139 + $0x8] sm:$0xff]
      %v150 = vld [vmem:[%s139 + $0x10] sm:$0xff]
      %v151 = vld [vmem:[%s139 + $0x18] sm:$0xff]
      %v152 = vld [vmem:[%s139 + $0x20] sm:$0xff]
      %v153 = vld [vmem:[%s139 + $0x28] sm:$0xff]
      %v154 = vld [vmem:[%s139 + $0x30] sm:$0xff]
      %v155 = vld [vmem:[%s139 + $0x38] sm:$0xff]
      %v156 = vld [vmem:[%s139 + $0x40] sm:$0xff]
      %v157 = vld [vmem:[%s139 + $0x48] sm:$0xff]
      %v158 = vld [vmem:[%s139 + $0x50] sm:$0xff]
      %v159 = vld [vmem:[%s139 + $0x58] sm:$0xff]
      %v160 = vld [vmem:[%s139 + $0x60] sm:$0xff]
      %v161 = vld [vmem:[%s139 + $0x68] sm:$0xff]
      %v162 = vld [vmem:[%s139 + $0x70] sm:$0xff]
      %v163 = vld [vmem:[%s139 + $0x78] sm:$0xff]
      %v164 = vpack.c.bf16 %v149, %v148
      %v165 = vpack.c.bf16 %v151, %v150
      %v166 = vpack.c.bf16 %v153, %v152
      %v167 = vpack.c.bf16 %v155, %v154
      %v168 = vpack.c.bf16 %v157, %v156
      %v169 = vpack.c.bf16 %v159, %v158
      %v170 = vpack.c.bf16 %v161, %v160
      %v171 = vpack.c.bf16 %v163, %v162
      %v172 = vld [vmem:[%s1] sm:$0xff]
      %v173 = vld [vmem:[%s1 + $0x8] sm:$0xff]
      %v174 = vpack.c.bf16 %v173, %v172
      %vm175 = vcmask 130048
      %v177 = vsel %vm175, %v164, 0
      %v180 = vsel %vm175, %v165, 0
      %v183 = vsel %vm175, %v166, 0
      %v186 = vsel %vm175, %v167, 0
      %v189 = vsel %vm175, %v168, 0
      %v192 = vsel %vm175, %v169, 0
      %v195 = vsel %vm175, %v170, 0
      %v198 = vsel %vm175, %v171, 0
      %200 = vmatprep.subr.bf16.mxu0 0
      %201 = vmatpush1.bf16.msra.mxu0 %v174
      %202 = vmatprep.subr.bf16.mxu0 0
      %203 = vmatpush1.bf16.msra.mxu0 0
      %204 = vmatprep.subr.bf16.mxu0 0
      %205 = vmatpush1.bf16.msra.mxu0 0
      %206 = vmatprep.subr.bf16.mxu0 0
      %207 = vmatpush1.bf16.msra.mxu0 0
      %208 = vmatprep.subr.bf16.mxu0 0
      %209 = vmatpush1.bf16.msra.mxu0 0
      %210 = vmatprep.subr.bf16.mxu0 0
      %211 = vmatpush1.bf16.msra.mxu0 0
      %212 = vmatprep.subr.bf16.mxu0 0
      %213 = vmatpush1.bf16.msra.mxu0 0
      %214 = vmatprep.subr.bf16.mxu0 0
      %215 = vmatpush1.bf16.msra.mxu0 0
      %216 = vmatprep.subr.bf16.mxu0 0
      %217 = vmatpush1.bf16.msra.mxu0 0
      %218 = vmatprep.subr.bf16.mxu0 0
      %219 = vmatpush1.bf16.msra.mxu0 0
      %220 = vmatprep.subr.bf16.mxu0 0
      %221 = vmatpush1.bf16.msra.mxu0 0
      %222 = vmatprep.subr.bf16.mxu0 0
      %223 = vmatpush1.bf16.msra.mxu0 0
      %224 = vmatprep.subr.bf16.mxu0 0
      %225 = vmatpush1.bf16.msra.mxu0 0
      %226 = vmatprep.subr.bf16.mxu0 0
      %227 = vmatpush1.bf16.msra.mxu0 0
      %228 = vmatprep.subr.bf16.mxu0 0
      %229 = vmatpush1.bf16.msra.mxu0 0
      %230 = vmatprep.subr.bf16.mxu0 0
      %231 = vmatpush1.bf16.msra.mxu0 0
      %232 = vmatprep.mubr.bf16.mxu0 0
      %233 = vmatmul.mubr.bf16.gmra.mrb[0].mxu0 %v177
      %v234 = vpop.f32.mrb[0].mxu0
      %v235 = vadd.f32 0.0, %v234
      %v236 = vpop.f32.mrb[0].mxu0
      %v237 = vpop.f32.mrb[0].mxu0
      %v238 = vadd.f32 0.0, %v237
      %v239 = vpop.f32.mrb[0].mxu0
      %240 = vmatprep.mubr.bf16.mxu0 0
      %241 = vmatmul.mubr.bf16.gmra.mrb[0].mxu0 %v180
      %v242 = vpop.f32.mrb[0].mxu0
      %v243 = vadd.f32 0.0, %v242
      %v244 = vpop.f32.mrb[0].mxu0
      %v245 = vpop.f32.mrb[0].mxu0
      %v246 = vadd.f32 0.0, %v245
      %v247 = vpop.f32.mrb[0].mxu0
      %248 = vmatprep.mubr.bf16.mxu0 0
      %249 = vmatmul.mubr.bf16.gmra.mrb[0].mxu0 %v183
      %v250 = vpop.f32.mrb[0].mxu0
      %v251 = vadd.f32 0.0, %v250
      %v252 = vpop.f32.mrb[0].mxu0
      %v253 = vpop.f32.mrb[0].mxu0
      %v254 = vadd.f32 0.0, %v253
      %v255 = vpop.f32.mrb[0].mxu0
      %256 = vmatprep.mubr.bf16.mxu0 0
      %257 = vmatmul.mubr.bf16.gmra.mrb[0].mxu0 %v186
      %v258 = vpop.f32.mrb[0].mxu0
      %v259 = vadd.f32 0.0, %v258
      %v260 = vpop.f32.mrb[0].mxu0
      %v261 = vpop.f32.mrb[0].mxu0
      %v262 = vadd.f32 0.0, %v261
      %v263 = vpop.f32.mrb[0].mxu0
      %264 = vmatprep.mubr.bf16.mxu0 0
      %265 = vmatmul.mubr.bf16.gmra.mrb[0].mxu0 %v189
      %v266 = vpop.f32.mrb[0].mxu0
      %v267 = vadd.f32 0.0, %v266
      %v268 = vpop.f32.mrb[0].mxu0
      %v269 = vpop.f32.mrb[0].mxu0
      %v270 = vadd.f32 0.0, %v269
      %v271 = vpop.f32.mrb[0].mxu0
      %272 = vmatprep.mubr.bf16.mxu0 0
      %273 = vmatmul.mubr.bf16.gmra.mrb[0].mxu0 %v192
      %v274 = vpop.f32.mrb[0].mxu0
      %v275 = vadd.f32 0.0, %v274
      %v276 = vpop.f32.mrb[0].mxu0
      %v277 = vpop.f32.mrb[0].mxu0
      %v278 = vadd.f32 0.0, %v277
      %v279 = vpop.f32.mrb[0].mxu0
      %280 = vmatprep.mubr.bf16.mxu0 0
      %281 = vmatmul.mubr.bf16.gmra.mrb[0].mxu0 %v195
      %v282 = vpop.f32.mrb[0].mxu0
      %v283 = vadd.f32 0.0, %v282
      %v284 = vpop.f32.mrb[0].mxu0
      %v285 = vpop.f32.mrb[0].mxu0
      %v286 = vadd.f32 0.0, %v285
      %v287 = vpop.f32.mrb[0].mxu0
      %288 = vmatprep.mubr.bf16.mxu0 0
      %289 = vmatmul.mubr.bf16.gmra.mrb[0].mxu0 %v198
      %v290 = vpop.f32.mrb[0].mxu0
      %v291 = vadd.f32 0.0, %v290
      %v292 = vpop.f32.mrb[0].mxu0
      %v293 = vpop.f32.mrb[0].mxu0
      %v294 = vadd.f32 0.0, %v293
      %v295 = vpop.f32.mrb[0].mxu0
      %296 = vdwg.mxu0
      %v297 = vpack.c.bf16 %v238, %v235
      %v298 = vpack.c.bf16 %v246, %v243
      %v299 = vpack.c.bf16 %v254, %v251
      %v300 = vpack.c.bf16 %v262, %v259
      %v301 = vpack.c.bf16 %v270, %v267
      %v302 = vpack.c.bf16 %v278, %v275
      %v303 = vpack.c.bf16 %v286, %v283
      %v304 = vpack.c.bf16 %v294, %v291
      %v313 = vunpack.c.l.b16 %v297
      %v314 = vunpack.c.h.b16 %v297
      %v315 = vunpack.c.l.b16 %v298
      %v316 = vunpack.c.h.b16 %v298
      %v317 = vunpack.c.l.b16 %v299
      %v318 = vunpack.c.h.b16 %v299
      %v319 = vunpack.c.l.b16 %v300
      %v320 = vunpack.c.h.b16 %v300
      %v321 = vunpack.c.l.b16 %v301
      %v322 = vunpack.c.h.b16 %v301
      %v323 = vunpack.c.l.b16 %v302
      %v324 = vunpack.c.h.b16 %v302
      %v325 = vunpack.c.l.b16 %v303
      %v326 = vunpack.c.h.b16 %v303
      %v327 = vunpack.c.l.b16 %v304
      %v328 = vunpack.c.h.b16 %v304
      %v329 = vpack.c.b16 %v313, %v313
      %v330 = vpack.c.b16 %v314, %v314
      %v331 = vpack.c.b16 %v315, %v315
      %v332 = vpack.c.b16 %v316, %v316
      %v333 = vpack.c.b16 %v317, %v317
      %v334 = vpack.c.b16 %v318, %v318
      %v335 = vpack.c.b16 %v319, %v319
      %v336 = vpack.c.b16 %v320, %v320
      %v337 = vpack.c.b16 %v321, %v321
      %v338 = vpack.c.b16 %v322, %v322
      %v339 = vpack.c.b16 %v323, %v323
      %v340 = vpack.c.b16 %v324, %v324
      %v341 = vpack.c.b16 %v325, %v325
      %v342 = vpack.c.b16 %v326, %v326
      %v343 = vpack.c.b16 %v327, %v327
      %v344 = vpack.c.b16 %v328, %v328
      %361 = vst [vmem:[%s145] sm:$0xf] %v329
      %362 = vst [vmem:[%s145 + $0x4] sm:$0xf] %v330
      %363 = vst [vmem:[%s145 + $0x8] sm:$0xf] %v331
      %364 = vst [vmem:[%s145 + $0xc] sm:$0xf] %v332
      %365 = vst [vmem:[%s145 + $0x10] sm:$0xf] %v333
      %366 = vst [vmem:[%s145 + $0x14] sm:$0xf] %v334
      %367 = vst [vmem:[%s145 + $0x18] sm:$0xf] %v335
      %368 = vst [vmem:[%s145 + $0x1c] sm:$0xf] %v336
      %369 = vst [vmem:[%s145 + $0x20] sm:$0xf] %v337
      %370 = vst [vmem:[%s145 + $0x24] sm:$0xf] %v338
      %371 = vst [vmem:[%s145 + $0x28] sm:$0xf] %v339
      %372 = vst [vmem:[%s145 + $0x2c] sm:$0xf] %v340
      %373 = vst [vmem:[%s145 + $0x30] sm:$0xf] %v341
      %374 = vst [vmem:[%s145 + $0x34] sm:$0xf] %v342
      %375 = vst [vmem:[%s145 + $0x38] sm:$0xf] %v343
      %376 = vst [vmem:[%s145 + $0x3c] sm:$0xf] %v344
      %s377 = smul.u32 16, %s13
      %p378 = scmp.lt.s32.totalorder %s377, 47
      %s379 = scalar_select %p378, %s377, 47
      %s380 = smul.addr %s379, 4
      %s381 = scalar_lea.vmem %s2, %s380
      // Predicated region
      $region29: #{gcn_forward.3} parent=27 // pred_check
        %p382 = pneg %p78
      $region30: #{gcn_forward.3} parent=27 // pred_check_branch
        %384 = sbr.rel (%p382) target = $region32
      $region31: #{gcn_forward.3} parent=27 // pred_region
        %s385 = smul.u32 16, %s13
      $region32: #{gcn_forward.3} parent=27 // pred_fallthru
        _
    $region28: #{gcn_forward.3} parent=5 // pred_fallthru
      _
    %p386 = scmp.le.s32.totalorder 2, %s8
    // Predicated region
    $region33: #{gcn_forward.3} parent=5 // pred_check
      %p387 = pneg %p386
    $region34: #{gcn_forward.3} parent=5 // pred_check_branch
      %389 = sbr.rel (%p387) target = $region36
    $region35: #{gcn_forward.3} parent=5 // pred_region
      %s390 = ssub.s32 %s8, 2
      // Predicated region
      $region37: #{gcn_forward.3} parent=35 // pred_check
        %p391 = pneg %p84
      $region38: #{gcn_forward.3} parent=35 // pred_check_branch
        %393 = sbr.rel (%p391) target = $region40
      $region39: #{gcn_forward.3} parent=35 // pred_region
        %s394 = smul.u32 16, %s14
        %p395 = scmp.lt.s32.totalorder %s394, 47
        %s396 = scalar_select %p395, %s394, 47
        %s397 = smul.addr %s396, 4
        %s398 = scalar_lea.vmem %s2, %s397
      $region40: #{gcn_forward.3} parent=35 // pred_fallthru
        _
    $region36: #{gcn_forward.3} parent=5 // pred_fallthru
      _
  $region6: #{gcn_forward.3} parent=0 // loop_footer
    %s12 = sadd.s32 1, %s8
  $region7: #{gcn_forward.3} parent=0 // loop_footer_branch
    %7 = sbr.rel target = $region3
  $region8: #{gcn_forward.3} parent=0 // loop_exit
    _

// kernel: gcn_forward.5
$region0: #{gcn_forward.5}
  #allocation0 [shape = 'u32[]', space=smem, size = 0x4, offset = 0x4, fixed_abs, tag = 'smem constant byte address 0x4 - core index']
  #allocation1 [shape = 'u32[144,128]{1,0:T(1,128)}', space=vmem, size = 0x12000, scoped, tag = 'internal scratch']
  #allocation2 [shape = 'f32[128,128]{1,0:T(8,128)}', space=vmem, size = 0x10000, scoped, tag = 'scratch operand']
  %s0 = inlined_call_operand.vmem [shape: bf16[384,384], index: 0, kind: input, shape index: {}]
  %s1 = inlined_call_operand.vmem [shape: bf16[384,128], index: 1, kind: input, shape index: {}]
  %s2 = inlined_call_operand.vmem [shape: f32[1,128], index: 2, kind: input, shape index: {}]
  %s3 = inlined_call_operand.vmem [shape: f32[384,128], index: 3, kind: output, shape index: {}]
  %s4 = sld [smem:[#allocation0]]
  $region94: #{gcn_forward.5} parent=0
    _
  %s6 = ssub.s32 1, %s4
  %s7 = scalar_select 0, %s6, %s4
  $region1: #{gcn_forward.5} parent=0
    #allocation3 [shape = 'u8[65536]{0}', space=vmem, size = 0x10000, scoped, tag = 'input window, operand 0']
    loop: start=0, step=1, limit=11
    $region2: #{gcn_forward.5} parent=1 // loop_pre_header
      _
    $region3: #{gcn_forward.5} parent=1 // loop_header
      %s9 = sphi 0, %s13
      %p10 = scmp.ge.s32.totalorder %s9, 11
      %s16 = sphi 0, %s28
      %s17 = sphi 0, %s24
      %s18 = sphi 0, %s16
      %s19 = sphi 0, %s17
      %s20 = sphi 0, %s18
      %s21 = sphi 0, %s19
      %s33 = sphi 0, %s35
      %s36 = sphi 0, %s33
      %s37 = sphi 0, %s36
      %s53 = sphi 0, %s37
      %s59 = sphi 0, %s61
      %s62 = sphi 0, %s59
      %s63 = sphi 0, %s62
      %s79 = sphi 0, %s63
      %s83 = sphi 0, %s83
      %s85 = sphi 0, %s83
      %s86 = sphi 0, %s85
      %s100 = sphi 0, %s86
      %s106 = sphi 0, %s108
      %s109 = sphi 0, %s106
      %s110 = sphi 0, %s109
      %s126 = sphi 0, %s110
    $region4: #{gcn_forward.5} parent=1 // loop_header_branch
      %12 = sbr.rel (%p10) target = $region8
    $region5: #{gcn_forward.5} parent=1 // loop_body
      %s14 = ssub.s32 %s9, 1
      %s15 = ssub.s32 %s9, 2
      %s22 = sadd.s32 1, %s17
      %p23 = scmp.ge.s32.totalorder %s22, 3
      %s24 = scalar_select %p23, 0, %s22
      %s25 = sadd.s32 1, %s16
      %s26 = scalar_select %p23, %s25, %s16
      %p27 = scmp.ge.s32.totalorder %s26, 3
      %s28 = scalar_select %p27, 0, %s26
      %s29 = ssub.s32 %s16, %s28
      %s30 = ssub.s32 %s17, %s24
      %s31 = sor.u32 %s29, %s30
      %p32 = scmp.eq.s32.totalorder %s31, 0
      %s34 = sadd.s32 %s33, 1
      %s35 = scalar_select %p32, %s33, %s34
      %p38 = pneg %p32
      %p39 = scmp.eq.s32.totalorder %s9, 8
      %p40 = por %p38, %p39
      %p41 = scmp.ne.s32.totalorder %s33, %s36
      %p42 = scmp.eq.s32.totalorder %s9, 0
      %p43 = por %p41, %p42
      %p44 = scmp.ne.s32.totalorder %s33, %s36
      %p45 = scmp.eq.s32.totalorder %s14, 8
      %p46 = por %p44, %p45
      %p47 = scmp.ne.s32.totalorder %s36, %s37
      %p48 = scmp.eq.s32.totalorder %s14, 0
      %p49 = por %p47, %p48
      %p50 = scmp.ne.s32.totalorder %s36, %s37
      %p51 = scmp.eq.s32.totalorder %s15, 8
      %p52 = por %p50, %p51
      %p54 = scmp.ne.s32.totalorder %s37, %s53
      %p55 = scmp.eq.s32.totalorder %s15, 0
      %p56 = por %p54, %p55
      %s57 = ssub.s32 %s17, %s24
      %p58 = scmp.eq.s32.totalorder %s57, 0
      %s60 = sadd.s32 %s59, 1
      %s61 = scalar_select %p58, %s59, %s60
      %p64 = pneg %p58
      %p65 = scmp.eq.s32.totalorder %s9, 8
      %p66 = por %p64, %p65
      %p67 = scmp.ne.s32.totalorder %s59, %s62
      %p68 = scmp.eq.s32.totalorder %s9, 0
      %p69 = por %p67, %p68
      %p70 = scmp.ne.s32.totalorder %s59, %s62
      %p71 = scmp.eq.s32.totalorder %s14, 8
      %p72 = por %p70, %p71
      %p73 = scmp.ne.s32.totalorder %s62, %s63
      %p74 = scmp.eq.s32.totalorder %s14, 0
      %p75 = por %p73, %p74
      %p76 = scmp.ne.s32.totalorder %s62, %s63
      %p77 = scmp.eq.s32.totalorder %s15, 8
      %p78 = por %p76, %p77
      %p80 = scmp.ne.s32.totalorder %s63, %s79
      %p81 = scmp.eq.s32.totalorder %s15, 0
      %p82 = por %p80, %p81
      %s84 = sadd.s32 %s83, 1
      %p87 = scmp.eq.s32.totalorder %s9, 8
      %p88 = scmp.ne.s32.totalorder %s83, %s85
      %p89 = scmp.eq.s32.totalorder %s9, 0
      %p90 = por %p88, %p89
      %p91 = scmp.ne.s32.totalorder %s83, %s85
      %p92 = scmp.eq.s32.totalorder %s14, 8
      %p93 = por %p91, %p92
      %p94 = scmp.ne.s32.totalorder %s85, %s86
      %p95 = scmp.eq.s32.totalorder %s14, 0
      %p96 = por %p94, %p95
      %p97 = scmp.ne.s32.totalorder %s85, %s86
      %p98 = scmp.eq.s32.totalorder %s15, 8
      %p99 = por %p97, %p98
      %p101 = scmp.ne.s32.totalorder %s86, %s100
      %p102 = scmp.eq.s32.totalorder %s15, 0
      %p103 = por %p101, %p102
      %s104 = ssub.s32 %s16, %s28
      %p105 = scmp.eq.s32.totalorder %s104, 0
      %s107 = sadd.s32 %s106, 1
      %s108 = scalar_select %p105, %s106, %s107
      %p111 = pneg %p105
      %p112 = scmp.eq.s32.totalorder %s9, 8
      %p113 = por %p111, %p112
      %p114 = scmp.ne.s32.totalorder %s106, %s109
      %p115 = scmp.eq.s32.totalorder %s9, 0
      %p116 = por %p114, %p115
      %p117 = scmp.ne.s32.totalorder %s106, %s109
      %p118 = scmp.eq.s32.totalorder %s14, 8
      %p119 = por %p117, %p118
      %p120 = scmp.ne.s32.totalorder %s109, %s110
      %p121 = scmp.eq.s32.totalorder %s14, 0
      %p122 = por %p120, %p121
      %p123 = scmp.ne.s32.totalorder %s109, %s110
      %p124 = scmp.eq.s32.totalorder %s15, 8
      %p125 = por %p123, %p124
      %p127 = scmp.ne.s32.totalorder %s110, %s126
      %p128 = scmp.eq.s32.totalorder %s15, 0
      %p129 = por %p127, %p128
      %p130 = scmp.le.s32.totalorder 1, %s9
      %p131 = scmp.lt.s32.totalorder %s9, 10
      %p132 = pnand %p130, %p131
      %p133 = pneg %p132
      // Predicated region
      $region9: #{gcn_forward.5} parent=5 // pred_check
        _
      $region10: #{gcn_forward.5} parent=5 // pred_check_branch
        %135 = sbr.rel (%p132) target = $region12
      $region11: #{gcn_forward.5} parent=5 // pred_region
        %s136 = ssub.s32 %s9, 1
        // Predicated region
        $region13: #{gcn_forward.5} parent=11 // pred_check
          %p137 = pneg %p96
        $region14: #{gcn_forward.5} parent=11 // pred_check_branch
          %139 = sbr.rel (%p137) target = $region16
        $region15: #{gcn_forward.5} parent=11 // pred_region
          _
        $region16: #{gcn_forward.5} parent=11 // pred_fallthru
          _
      $region12: #{gcn_forward.5} parent=5 // pred_fallthru
        _
      %p140 = scmp.lt.s32.totalorder %s9, 9
      // Predicated region
      $region17: #{gcn_forward.5} parent=5 // pred_check
        %p141 = pneg %p140
      $region18: #{gcn_forward.5} parent=5 // pred_check_branch
        %143 = sbr.rel (%p141) target = $region20
      $region19: #{gcn_forward.5} parent=5 // pred_region
        // Predicated region
        $region21: #{gcn_forward.5} parent=19 // pred_check
          %p144 = pneg %p43
        $region22: #{gcn_forward.5} parent=19 // pred_check_branch
          %146 = sbr.rel (%p144) target = $region24
        $region23: #{gcn_forward.5} parent=19 // pred_region
          %s147 = sand.u32 %s33, 1
          %s148 = sand.u32 %s33, 1
          %s149 = smul.addr %s148, 64
          %s150 = scalar_lea.vmem [#allocation3], %s149
          %s151 = smul.u32 16, %s16
          %s152 = smul.addr %s151, 3
          %s153 = sadd.s32 %s17, %s152
          %s154 = smul.addr %s153, 4
          %s155 = scalar_lea.vmem %s0, %s154
          // Predicated region
          $region25: #{gcn_forward.5} parent=23 // pred_check
            _
          $region26: #{gcn_forward.5} parent=23 // pred_check_branch
            %157 = sbr.rel (0) target = $region28
          $region27: #{gcn_forward.5} parent=23 // pred_region
            // Predicated region
            $region29: #{gcn_forward.5} parent=27 // pred_check
              _
            $region30: #{gcn_forward.5} parent=27 // pred_check_branch
              %159 = sbr.rel target = $region32
            $region31: #{gcn_forward.5} parent=27 // pred_region
              // Predicated region
              $region44: #{gcn_forward.5} parent=31 // pred_check
                _
              $region45: #{gcn_forward.5} parent=31 // pred_check_branch
                %204 = sbr.rel (0) target = $region47
              $region46: #{gcn_forward.5} parent=31 // pred_region
                loop: start=0, step=1, limit=1
                $region48: #{gcn_forward.5} parent=46 // loop_pre_header
                  _
                $region49: #{gcn_forward.5} parent=46 // loop_header
                  %s206 = sphi 0, %s210
                  %p207 = scmp.ge.s32.totalorder %s206, 1
                  %s211 = sphi %s155, %s155
                  %s212 = sphi %s150, %s150
                $region50: #{gcn_forward.5} parent=46 // loop_header_branch
                  %209 = sbr.rel (%p207) target = $region54
                $region51: #{gcn_forward.5} parent=46 // loop_body
                  _
                $region52: #{gcn_forward.5} parent=46 // loop_footer
                  %s210 = sadd.s32 1, %s206
                $region53: #{gcn_forward.5} parent=46 // loop_footer_branch
                  %205 = sbr.rel target = $region49
                $region54: #{gcn_forward.5} parent=46 // loop_exit
                  _
                loop: start=0, step=1, limit=1
                $region55: #{gcn_forward.5} parent=46 // loop_pre_header
                  _
                $region56: #{gcn_forward.5} parent=46 // loop_header
                  %s215 = sphi 0, %s219
                  %p216 = scmp.ge.s32.totalorder %s215, 1
                  %s220 = sphi %s155, %s155
                  %s221 = sphi %s150, %s150
                $region57: #{gcn_forward.5} parent=46 // loop_header_branch
                  %218 = sbr.rel (%p216) target = $region61
                $region58: #{gcn_forward.5} parent=46 // loop_body
                  %v222 = vld [vmem:[%s220] sm:$0xf]
                  %223 = vst [vmem:[%s221] sm:$0xf] %v222
                  %v224 = vld [vmem:[%s220 + $0xc] sm:$0xf]
                  %225 = vst [vmem:[%s221 + $0x4] sm:$0xf] %v224
                  %v226 = vld [vmem:[%s220 + $0x18] sm:$0xf]
                  %227 = vst [vmem:[%s221 + $0x8] sm:$0xf] %v226
                  %v228 = vld [vmem:[%s220 + $0x24] sm:$0xf]
                  %229 = vst [vmem:[%s221 + $0xc] sm:$0xf] %v228
                  %v230 = vld [vmem:[%s220 + $0x30] sm:$0xf]
                  %231 = vst [vmem:[%s221 + $0x10] sm:$0xf] %v230
                  %v232 = vld [vmem:[%s220 + $0x3c] sm:$0xf]
                  %233 = vst [vmem:[%s221 + $0x14] sm:$0xf] %v232
                  %v234 = vld [vmem:[%s220 + $0x48] sm:$0xf]
                  %235 = vst [vmem:[%s221 + $0x18] sm:$0xf] %v234
                  %v236 = vld [vmem:[%s220 + $0x54] sm:$0xf]
                  %237 = vst [vmem:[%s221 + $0x1c] sm:$0xf] %v236
                  %v238 = vld [vmem:[%s220 + $0x60] sm:$0xf]
                  %239 = vst [vmem:[%s221 + $0x20] sm:$0xf] %v238
                  %v240 = vld [vmem:[%s220 + $0x6c] sm:$0xf]
                  %241 = vst [vmem:[%s221 + $0x24] sm:$0xf] %v240
                  %v242 = vld [vmem:[%s220 + $0x78] sm:$0xf]
                  %243 = vst [vmem:[%s221 + $0x28] sm:$0xf] %v242
                  %v244 = vld [vmem:[%s220 + $0x84] sm:$0xf]
                  %245 = vst [vmem:[%s221 + $0x2c] sm:$0xf] %v244
                  %v246 = vld [vmem:[%s220 + $0x90] sm:$0xf]
                  %247 = vst [vmem:[%s221 + $0x30] sm:$0xf] %v246
                  %v248 = vld [vmem:[%s220 + $0x9c] sm:$0xf]
                  %249 = vst [vmem:[%s221 + $0x34] sm:$0xf] %v248
                  %v250 = vld [vmem:[%s220 + $0xa8] sm:$0xf]
                  %251 = vst [vmem:[%s221 + $0x38] sm:$0xf] %v250
                  %v252 = vld [vmem:[%s220 + $0xb4] sm:$0xf]
                  %253 = vst [vmem:[%s221 + $0x3c] sm:$0xf] %v252
                $region59: #{gcn_forward.5} parent=46 // loop_footer
                  %s219 = sadd.s32 1, %s215
                $region60: #{gcn_forward.5} parent=46 // loop_footer_branch
                  %214 = sbr.rel target = $region56
                $region61: #{gcn_forward.5} parent=46 // loop_exit
                  _
              $region47: #{gcn_forward.5} parent=31 // pred_fallthru
                _
            $region32: #{gcn_forward.5} parent=27 // pred_fallthru
              _
            // Predicated region
            $region33: #{gcn_forward.5} parent=27 // pred_check
              _
            $region34: #{gcn_forward.5} parent=27 // pred_check_branch
              %161 = sbr.rel (0) target = $region36
            $region35: #{gcn_forward.5} parent=27 // pred_region
              loop: start=0, step=1, limit=1
              $region37: #{gcn_forward.5} parent=35 // loop_pre_header
                _
              $region38: #{gcn_forward.5} parent=35 // loop_header
                %s164 = sphi 0, %s168
                %p165 = scmp.ge.s32.totalorder %s164, 1
                %s169 = sphi %s155, %s155
                %s170 = sphi %s150, %s150
              $region39: #{gcn_forward.5} parent=35 // loop_header_branch
                %167 = sbr.rel (%p165) target = $region43
              $region40: #{gcn_forward.5} parent=35 // loop_body
                %v171 = vld [vmem:[%s169] sm:$0xf]
                %172 = vst [vmem:[%s170] sm:$0xf] %v171
                %v173 = vld [vmem:[%s169 + $0xc] sm:$0xf]
                %174 = vst [vmem:[%s170 + $0x4] sm:$0xf] %v173
                %v175 = vld [vmem:[%s169 + $0x18] sm:$0xf]
                %176 = vst [vmem:[%s170 + $0x8] sm:$0xf] %v175
                %v177 = vld [vmem:[%s169 + $0x24] sm:$0xf]
                %178 = vst [vmem:[%s170 + $0xc] sm:$0xf] %v177
                %v179 = vld [vmem:[%s169 + $0x30] sm:$0xf]
                %180 = vst [vmem:[%s170 + $0x10] sm:$0xf] %v179
                %v181 = vld [vmem:[%s169 + $0x3c] sm:$0xf]
                %182 = vst [vmem:[%s170 + $0x14] sm:$0xf] %v181
                %v183 = vld [vmem:[%s169 + $0x48] sm:$0xf]
                %184 = vst [vmem:[%s170 + $0x18] sm:$0xf] %v183
                %v185 = vld [vmem:[%s169 + $0x54] sm:$0xf]
                %186 = vst [vmem:[%s170 + $0x1c] sm:$0xf] %v185
                %v187 = vld [vmem:[%s169 + $0x60] sm:$0xf]
                %188 = vst [vmem:[%s170 + $0x20] sm:$0xf] %v187
                %v189 = vld [vmem:[%s169 + $0x6c] sm:$0xf]
                %190 = vst [vmem:[%s170 + $0x24] sm:$0xf] %v189
                %v191 = vld [vmem:[%s169 + $0x78] sm:$0xf]
                %192 = vst [vmem:[%s170 + $0x28] sm:$0xf] %v191
                %v193 = vld [vmem:[%s169 + $0x84] sm:$0xf]
                %194 = vst [vmem:[%s170 + $0x2c] sm:$0xf] %v193
                %v195 = vld [vmem:[%s169 + $0x90] sm:$0xf]
                %196 = vst [vmem:[%s170 + $0x30] sm:$0xf] %v195
                %v197 = vld [vmem:[%s169 + $0x9c] sm:$0xf]
                %198 = vst [vmem:[%s170 + $0x34] sm:$0xf] %v197
                %v199 = vld [vmem:[%s169 + $0xa8] sm:$0xf]
                %200 = vst [vmem:[%s170 + $0x38] sm:$0xf] %v199
                %v201 = vld [vmem:[%s169 + $0xb4] sm:$0xf]
                %202 = vst [vmem:[%s170 + $0x3c] sm:$0xf] %v201
              $region41: #{gcn_forward.5} parent=35 // loop_footer
                %s168 = sadd.s32 1, %s164
              $region42: #{gcn_forward.5} parent=35 // loop_footer_branch
                %163 = sbr.rel target = $region38
              $region43: #{gcn_forward.5} parent=35 // loop_exit
                _
            $region36: #{gcn_forward.5} parent=27 // pred_fallthru
              _
          $region28: #{gcn_forward.5} parent=23 // pred_fallthru
            _
          %254 = vnop
        $region24: #{gcn_forward.5} parent=19 // pred_fallthru
          _
        // Predicated region
        $region62: #{gcn_forward.5} parent=19 // pred_check
          %p255 = pneg %p69
        $region63: #{gcn_forward.5} parent=19 // pred_check_branch
          %257 = sbr.rel (%p255) target = $region65
        $region64: #{gcn_forward.5} parent=19 // pred_region
          %s258 = smul.u32 16, %s17
          %p259 = scmp.lt.s32.totalorder %s258, 47
          %s260 = scalar_select %p259, %s258, 47
          %s261 = smul.addr %s260, 4
          %s262 = scalar_lea.vmem %s1, %s261
          %s263 = smul.u32 16, %s17
        $region65: #{gcn_forward.5} parent=19 // pred_fallthru
          _
      $region20: #{gcn_forward.5} parent=5 // pred_fallthru
        _
      %p264 = scmp.le.s32.totalorder 1, %s9
      %p265 = scmp.lt.s32.totalorder %s9, 10
      %p266 = pnand %p264, %p265
      %p267 = pneg %p266
      // Predicated region
      $region66: #{gcn_forward.5} parent=5 // pred_check
        _
      $region67: #{gcn_forward.5} parent=5 // pred_check_branch
        %269 = sbr.rel (%p266) target = $region69
      $region68: #{gcn_forward.5} parent=5 // pred_region
        %s270 = ssub.s32 %s9, 1
        %s271 = sand.u32 %s36, 1
        %s272 = sand.u32 %s36, 1
        %s273 = smul.addr %s272, 64
        %s274 = scalar_lea.vmem [#allocation3], %s273
        // Predicated region
        $region70: #{gcn_forward.5} parent=68 // pred_check
          %p275 = pneg %p49
        $region71: #{gcn_forward.5} parent=68 // pred_check_branch
          %277 = sbr.rel (%p275) target = $region73
        $region72: #{gcn_forward.5} parent=68 // pred_region
          _
        $region73: #{gcn_forward.5} parent=68 // pred_fallthru
          _
        %s278 = sand.u32 %s36, 1
        %s279 = sand.u32 %s36, 1
        %s280 = smul.addr %s279, 64
        %s281 = scalar_lea.vmem [#allocation3], %s280
        %p282 = pneg %p49
        %p283 = pneg %p46
        %s284 = smul.u32 16, %s19
        %p285 = scmp.lt.s32.totalorder %s284, 47
        %s286 = scalar_select %p285, %s284, 47
        %s287 = smul.addr %s286, 4
        %s288 = scalar_lea.vmem %s1, %s287
        %p289 = pneg %p75
        %p290 = pneg %p72
        %p291 = pneg %p96
        %p292 = pneg %p93
        %p293 = pneg %p122
        %p294 = pneg %p119
        %s295 = smul.u32 16, %s18
        %p296 = scmp.lt.s32.totalorder %s295, 47
        %s297 = scalar_select %p296, %s295, 47
        %s298 = smul.addr %s297, 8
        %s299 = scalar_lea.vmem %s3, %s298
        %s300 = smul.u32 16, %s18
        %s301 = smul.u32 16, %s19
        %p302 = scmp.lt.s32.totalorder %s301, 47
        %s303 = scalar_select %p302, %s301, 47
        %s304 = smul.addr %s303, 4
        %s305 = scalar_lea.vmem %s1, %s304
        %s306 = smul.u32 16, %s19
        %s307 = smul.u32 16, %s18
        %p308 = scmp.lt.s32.totalorder %s307, 47
        %s309 = scalar_select %p308, %s307, 47
        %s310 = smul.addr %s309, 8
        %s311 = scalar_lea.vmem %s3, %s310
        %s312 = smul.u32 16, %s18
        %p314 = scmp.eq.s32.totalorder %s19, 0
        // Predicated region
        $region74: #{gcn_forward.5} parent=68 // pred_check
          %p315 = pneg %p314
        $region75: #{gcn_forward.5} parent=68 // pred_check_branch
          %317 = sbr.rel (%p315) target = $region77
        $region76: #{gcn_forward.5} parent=68 // pred_region
          %318 = vst [vmem:[#allocation2] sm:$0xff] 0.0
          %319 = vst [vmem:[#allocation2 + $0x8] sm:$0xff] 0.0
          %320 = vst [vmem:[#allocation2 + $0x10] sm:$0xff] 0.0
          %321 = vst [vmem:[#allocation2 + $0x18] sm:$0xff] 0.0
          %322 = vst [vmem:[#allocation2 + $0x20] sm:$0xff] 0.0
          %323 = vst [vmem:[#allocation2 + $0x28] sm:$0xff] 0.0
          %324 = vst [vmem:[#allocation2 + $0x30] sm:$0xff] 0.0
          %325 = vst [vmem:[#allocation2 + $0x38] sm:$0xff] 0.0
          %326 = vst [vmem:[#allocation2 + $0x40] sm:$0xff] 0.0
          %327 = vst [vmem:[#allocation2 + $0x48] sm:$0xff] 0.0
          %328 = vst [vmem:[#allocation2 + $0x50] sm:$0xff] 0.0
          %329 = vst [vmem:[#allocation2 + $0x58] sm:$0xff] 0.0
          %330 = vst [vmem:[#allocation2 + $0x60] sm:$0xff] 0.0
          %331 = vst [vmem:[#allocation2 + $0x68] sm:$0xff] 0.0
          %332 = vst [vmem:[#allocation2 + $0x70] sm:$0xff] 0.0
          %333 = vst [vmem:[#allocation2 + $0x78] sm:$0xff] 0.0
        $region77: #{gcn_forward.5} parent=68 // pred_fallthru
          _
        %v334 = vld [vmem:[#allocation2] sm:$0xff]
        %v335 = vld [vmem:[#allocation2 + $0x8] sm:$0xff]
        %v336 = vld [vmem:[#allocation2 + $0x10] sm:$0xff]
        %v337 = vld [vmem:[#allocation2 + $0x18] sm:$0xff]
        %v338 = vld [vmem:[#allocation2 + $0x20] sm:$0xff]
        %v339 = vld [vmem:[#allocation2 + $0x28] sm:$0xff]
        %v340 = vld [vmem:[#allocation2 + $0x30] sm:$0xff]
        %v341 = vld [vmem:[#allocation2 + $0x38] sm:$0xff]
        %v342 = vld [vmem:[#allocation2 + $0x40] sm:$0xff]
        %v343 = vld [vmem:[#allocation2 + $0x48] sm:$0xff]
        %v344 = vld [vmem:[#allocation2 + $0x50] sm:$0xff]
        %v345 = vld [vmem:[#allocation2 + $0x58] sm:$0xff]
        %v346 = vld [vmem:[#allocation2 + $0x60] sm:$0xff]
        %v347 = vld [vmem:[#allocation2 + $0x68] sm:$0xff]
        %v348 = vld [vmem:[#allocation2 + $0x70] sm:$0xff]
        %v349 = vld [vmem:[#allocation2 + $0x78] sm:$0xff]
        %v350 = vld [vmem:[%s274] sm:$0xf]
        %v351 = vld [vmem:[%s274 + $0x4] sm:$0xf]
        %v352 = vld [vmem:[%s274 + $0x8] sm:$0xf]
        %v353 = vld [vmem:[%s274 + $0xc] sm:$0xf]
        %v354 = vld [vmem:[%s274 + $0x10] sm:$0xf]
        %v355 = vld [vmem:[%s274 + $0x14] sm:$0xf]
        %v356 = vld [vmem:[%s274 + $0x18] sm:$0xf]
        %v357 = vld [vmem:[%s274 + $0x1c] sm:$0xf]
        %v358 = vld [vmem:[%s274 + $0x20] sm:$0xf]
        %v359 = vld [vmem:[%s274 + $0x24] sm:$0xf]
        %v360 = vld [vmem:[%s274 + $0x28] sm:$0xf]
        %v361 = vld [vmem:[%s274 + $0x2c] sm:$0xf]
        %v362 = vld [vmem:[%s274 + $0x30] sm:$0xf]
        %v363 = vld [vmem:[%s274 + $0x34] sm:$0xf]
        %v364 = vld [vmem:[%s274 + $0x38] sm:$0xf]
        %v365 = vld [vmem:[%s274 + $0x3c] sm:$0xf]
        %v366 = vld [vmem:[%s305] sm:$0xf]
        %v367 = vld [vmem:[%s305 + $0x4] sm:$0xf]
        %v368 = vld [vmem:[%s305 + $0x8] sm:$0xf]
        %v369 = vld [vmem:[%s305 + $0xc] sm:$0xf]
        %v370 = vld [vmem:[%s305 + $0x10] sm:$0xf]
        %v371 = vld [vmem:[%s305 + $0x14] sm:$0xf]
        %v372 = vld [vmem:[%s305 + $0x18] sm:$0xf]
        %v373 = vld [vmem:[%s305 + $0x1c] sm:$0xf]
        %v374 = vld [vmem:[%s305 + $0x20] sm:$0xf]
        %v375 = vld [vmem:[%s305 + $0x24] sm:$0xf]
        %v376 = vld [vmem:[%s305 + $0x28] sm:$0xf]
        %v377 = vld [vmem:[%s305 + $0x2c] sm:$0xf]
        %v378 = vld [vmem:[%s305 + $0x30] sm:$0xf]
        %v379 = vld [vmem:[%s305 + $0x34] sm:$0xf]
        %v380 = vld [vmem:[%s305 + $0x38] sm:$0xf]
        %v381 = vld [vmem:[%s305 + $0x3c] sm:$0xf]
        %v398 = vunpack.c.l.b16 %v350
        %v399 = vunpack.c.l.b16 %v351
        %v400 = vunpack.c.l.b16 %v352
        %v401 = vunpack.c.l.b16 %v353
        %v402 = vunpack.c.l.b16 %v354
        %v403 = vunpack.c.l.b16 %v355
        %v404 = vunpack.c.l.b16 %v356
        %v405 = vunpack.c.l.b16 %v357
        %v406 = vunpack.c.l.b16 %v358
        %v407 = vunpack.c.l.b16 %v359
        %v408 = vunpack.c.l.b16 %v360
        %v409 = vunpack.c.l.b16 %v361
        %v410 = vunpack.c.l.b16 %v362
        %v411 = vunpack.c.l.b16 %v363
        %v412 = vunpack.c.l.b16 %v364
        %v413 = vunpack.c.l.b16 %v365
        %v414 = vpack.c.b16 %v399, %v398
        %v415 = vpack.c.b16 %v401, %v400
        %v416 = vpack.c.b16 %v403, %v402
        %v417 = vpack.c.b16 %v405, %v404
        %v418 = vpack.c.b16 %v407, %v406
        %v419 = vpack.c.b16 %v409, %v408
        %v420 = vpack.c.b16 %v411, %v410
        %v421 = vpack.c.b16 %v413, %v412
        %v446 = vunpack.c.l.b16 %v366
        %v447 = vunpack.c.l.b16 %v367
        %v448 = vunpack.c.l.b16 %v368
        %v449 = vunpack.c.l.b16 %v369
        %v450 = vunpack.c.l.b16 %v370
        %v451 = vunpack.c.l.b16 %v371
        %v452 = vunpack.c.l.b16 %v372
        %v453 = vunpack.c.l.b16 %v373
        %v454 = vunpack.c.l.b16 %v374
        %v455 = vunpack.c.l.b16 %v375
        %v456 = vunpack.c.l.b16 %v376
        %v457 = vunpack.c.l.b16 %v377
        %v458 = vunpack.c.l.b16 %v378
        %v459 = vunpack.c.l.b16 %v379
        %v460 = vunpack.c.l.b16 %v380
        %v461 = vunpack.c.l.b16 %v381
        %v462 = vpack.c.b16 %v447, %v446
        %v463 = vpack.c.b16 %v449, %v448
        %v464 = vpack.c.b16 %v451, %v450
        %v465 = vpack.c.b16 %v453, %v452
        %v466 = vpack.c.b16 %v455, %v454
        %v467 = vpack.c.b16 %v457, %v456
        %v468 = vpack.c.b16 %v459, %v458
        %v469 = vpack.c.b16 %v461, %v460
        %478 = vmatprep.subr.bf16.mxu0 0
        %479 = vmatpush1.bf16.msra.mxu0 %v462
        %480 = vmatprep.subr.bf16.mxu0 0
        %481 = vmatpush1.bf16.msra.mxu0 %v463
        %482 = vmatprep.subr.bf16.mxu0 0
        %483 = vmatpush1.bf16.msra.mxu0 %v464
        %484 = vmatprep.subr.bf16.mxu0 0
        %485 = vmatpush1.bf16.msra.mxu0 %v465
        %486 = vmatprep.subr.bf16.mxu0 0
        %487 = vmatpush1.bf16.msra.mxu0 %v466
        %488 = vmatprep.subr.bf16.mxu0 0
        %489 = vmatpush1.bf16.msra.mxu0 %v467
        %490 = vmatprep.subr.bf16.mxu0 0
        %491 = vmatpush1.bf16.msra.mxu0 %v468
        %492 = vmatprep.subr.bf16.mxu0 0
        %493 = vmatpush1.bf16.msra.mxu0 %v469
        %494 = vmatprep.subr.bf16.mxu0 0
        %495 = vmatpush1.bf16.msra.mxu0 0
        %496 = vmatprep.subr.bf16.mxu0 0
        %497 = vmatpush1.bf16.msra.mxu0 0
        %498 = vmatprep.subr.bf16.mxu0 0
        %499 = vmatpush1.bf16.msra.mxu0 0
        %500 = vmatprep.subr.bf16.mxu0 0
        %501 = vmatpush1.bf16.msra.mxu0 0
        %502 = vmatprep.subr.bf16.mxu0 0
        %503 = vmatpush1.bf16.msra.mxu0 0
        %504 = vmatprep.subr.bf16.mxu0 0
        %505 = vmatpush1.bf16.msra.mxu0 0
        %506 = vmatprep.subr.bf16.mxu0 0
        %507 = vmatpush1.bf16.msra.mxu0 0
        %508 = vmatprep.subr.bf16.mxu0 0
        %509 = vmatpush1.bf16.msra.mxu0 0
        %510 = vmatprep.mubr.bf16.mxu0 0
        %511 = vmatmul.mubr.bf16.gmra.mrb[0].mxu0 %v414
        %v512 = vpop.f32.mrb[0].mxu0
        %v513 = vadd.f32 0.0, %v512
        %v514 = vpop.f32.mrb[0].mxu0
        %v515 = vpop.f32.mrb[0].mxu0
        %v516 = vadd.f32 0.0, %v515
        %v517 = vpop.f32.mrb[0].mxu0
        %518 = vmatprep.mubr.bf16.mxu0 0
        %519 = vmatmul.mubr.bf16.gmra.mrb[0].mxu0 %v415
        %v520 = vpop.f32.mrb[0].mxu0
        %v521 = vadd.f32 0.0, %v520
        %v522 = vpop.f32.mrb[0].mxu0
        %v523 = vpop.f32.mrb[0].mxu0
        %v524 = vadd.f32 0.0, %v523
        %v525 = vpop.f32.mrb[0].mxu0
        %526 = vmatprep.mubr.bf16.mxu0 0
        %527 = vmatmul.mubr.bf16.gmra.mrb[0].mxu0 %v416
        %v528 = vpop.f32.mrb[0].mxu0
        %v529 = vadd.f32 0.0, %v528
        %v530 = vpop.f32.mrb[0].mxu0
        %v531 = vpop.f32.mrb[0].mxu0
        %v532 = vadd.f32 0.0, %v531
        %v533 = vpop.f32.mrb[0].mxu0
        %534 = vmatprep.mubr.bf16.mxu0 0
        %535 = vmatmul.mubr.bf16.gmra.mrb[0].mxu0 %v417
        %v536 = vpop.f32.mrb[0].mxu0
        %v537 = vadd.f32 0.0, %v536
        %v538 = vpop.f32.mrb[0].mxu0
        %v539 = vpop.f32.mrb[0].mxu0
        %v540 = vadd.f32 0.0, %v539
        %v541 = vpop.f32.mrb[0].mxu0
        %542 = vmatprep.mubr.bf16.mxu0 0
        %543 = vmatmul.mubr.bf16.gmra.mrb[0].mxu0 %v418
        %v544 = vpop.f32.mrb[0].mxu0
        %v545 = vadd.f32 0.0, %v544
        %v546 = vpop.f32.mrb[0].mxu0
        %v547 = vpop.f32.mrb[0].mxu0
        %v548 = vadd.f32 0.0, %v547
        %v549 = vpop.f32.mrb[0].mxu0
        %550 = vmatprep.mubr.bf16.mxu0 0
        %551 = vmatmul.mubr.bf16.gmra.mrb[0].mxu0 %v419
        %v552 = vpop.f32.mrb[0].mxu0
        %v553 = vadd.f32 0.0, %v552
        %v554 = vpop.f32.mrb[0].mxu0
        %v555 = vpop.f32.mrb[0].mxu0
        %v556 = vadd.f32 0.0, %v555
        %v557 = vpop.f32.mrb[0].mxu0
        %558 = vmatprep.mubr.bf16.mxu0 0
        %559 = vmatmul.mubr.bf16.gmra.mrb[0].mxu0 %v420
        %v560 = vpop.f32.mrb[0].mxu0
        %v561 = vadd.f32 0.0, %v560
        %v562 = vpop.f32.mrb[0].mxu0
        %v563 = vpop.f32.mrb[0].mxu0
        %v564 = vadd.f32 0.0, %v563
        %v565 = vpop.f32.mrb[0].mxu0
        %566 = vmatprep.mubr.bf16.mxu0 0
        %567 = vmatmul.mubr.bf16.gmra.mrb[0].mxu0 %v421
        %v568 = vpop.f32.mrb[0].mxu0
        %v569 = vadd.f32 0.0, %v568
        %v570 = vpop.f32.mrb[0].mxu0
        %v571 = vpop.f32.mrb[0].mxu0
        %v572 = vadd.f32 0.0, %v571
        %v573 = vpop.f32.mrb[0].mxu0
        %574 = vdwg.mxu0
        %v575 = vadd.f32 %v334, %v513
        %v576 = vadd.f32 %v335, %v516
        %v577 = vadd.f32 %v336, %v521
        %v578 = vadd.f32 %v337, %v524
        %v579 = vadd.f32 %v338, %v529
        %v580 = vadd.f32 %v339, %v532
        %v581 = vadd.f32 %v340, %v537
        %v582 = vadd.f32 %v341, %v540
        %v583 = vadd.f32 %v342, %v545
        %v584 = vadd.f32 %v343, %v548
        %v585 = vadd.f32 %v344, %v553
        %v586 = vadd.f32 %v345, %v556
        %v587 = vadd.f32 %v346, %v561
        %v588 = vadd.f32 %v347, %v564
        %v589 = vadd.f32 %v348, %v569
        %v590 = vadd.f32 %v349, %v572
        %591 = vst [vmem:[#allocation2] sm:$0xff] %v575
        %592 = vst [vmem:[#allocation2 + $0x8] sm:$0xff] %v576
        %593 = vst [vmem:[#allocation2 + $0x10] sm:$0xff] %v577
        %594 = vst [vmem:[#allocation2 + $0x18] sm:$0xff] %v578
        %595 = vst [vmem:[#allocation2 + $0x20] sm:$0xff] %v579
        %596 = vst [vmem:[#allocation2 + $0x28] sm:$0xff] %v580
        %597 = vst [vmem:[#allocation2 + $0x30] sm:$0xff] %v581
        %598 = vst [vmem:[#allocation2 + $0x38] sm:$0xff] %v582
        %599 = vst [vmem:[#allocation2 + $0x40] sm:$0xff] %v583
        %600 = vst [vmem:[#allocation2 + $0x48] sm:$0xff] %v584
        %601 = vst [vmem:[#allocation2 + $0x50] sm:$0xff] %v585
        %602 = vst [vmem:[#allocation2 + $0x58] sm:$0xff] %v586
        %603 = vst [vmem:[#allocation2 + $0x60] sm:$0xff] %v587
        %604 = vst [vmem:[#allocation2 + $0x68] sm:$0xff] %v588
        %605 = vst [vmem:[#allocation2 + $0x70] sm:$0xff] %v589
        %606 = vst [vmem:[#allocation2 + $0x78] sm:$0xff] %v590
        %p607 = scmp.eq.s32.totalorder %s19, 2
        // Predicated region
        $region78: #{gcn_forward.5} parent=68 // pred_check
          %p608 = pneg %p607
        $region79: #{gcn_forward.5} parent=68 // pred_check_branch
          %610 = sbr.rel (%p608) target = $region81
        $region80: #{gcn_forward.5} parent=68 // pred_region
          %v611 = vld [vmem:[#allocation2] sm:$0xff]
          %v612 = vld [vmem:[#allocation2 + $0x8] sm:$0xff]
          %v613 = vld [vmem:[#allocation2 + $0x10] sm:$0xff]
          %v614 = vld [vmem:[#allocation2 + $0x18] sm:$0xff]
          %v615 = vld [vmem:[#allocation2 + $0x20] sm:$0xff]
          %v616 = vld [vmem:[#allocation2 + $0x28] sm:$0xff]
          %v617 = vld [vmem:[#allocation2 + $0x30] sm:$0xff]
          %v618 = vld [vmem:[#allocation2 + $0x38] sm:$0xff]
          %v619 = vld [vmem:[#allocation2 + $0x40] sm:$0xff]
          %v620 = vld [vmem:[#allocation2 + $0x48] sm:$0xff]
          %v621 = vld [vmem:[#allocation2 + $0x50] sm:$0xff]
          %v622 = vld [vmem:[#allocation2 + $0x58] sm:$0xff]
          %v623 = vld [vmem:[#allocation2 + $0x60] sm:$0xff]
          %v624 = vld [vmem:[#allocation2 + $0x68] sm:$0xff]
          %v625 = vld [vmem:[#allocation2 + $0x70] sm:$0xff]
          %v626 = vld [vmem:[#allocation2 + $0x78] sm:$0xff]
          %v627 = vld [vmem:[%s2] sm:$0x1]
          %v629 = vlaneseq
          %v630 = vshrl.u32 %v629, 7
          %v631 = vsub.s32 0, %v630
          %v632 = vrot.slane %v627, %v631
          %v634 = vadd.f32 %v611, %v632
          %v635 = vadd.f32 %v612, %v632
          %v636 = vadd.f32 %v613, %v632
          %v637 = vadd.f32 %v614, %v632
          %v638 = vadd.f32 %v615, %v632
          %v639 = vadd.f32 %v616, %v632
          %v640 = vadd.f32 %v617, %v632
          %v641 = vadd.f32 %v618, %v632
          %v642 = vadd.f32 %v619, %v632
          %v643 = vadd.f32 %v620, %v632
          %v644 = vadd.f32 %v621, %v632
          %v645 = vadd.f32 %v622, %v632
          %v646 = vadd.f32 %v623, %v632
          %v647 = vadd.f32 %v624, %v632
          %v648 = vadd.f32 %v625, %v632
          %v649 = vadd.f32 %v626, %v632
          %v650 = vlaneseq
          %v651 = vand.u32 %v650, 127
          %vm652 = vcmp.lt.s32.totalorder %v651, 8
          %v653 = vsel %vm652, %v634, -1e+30
          %v654 = vsel %vm652, %v635, -1e+30
          %v655 = vsel %vm652, %v636, -1e+30
          %v656 = vsel %vm652, %v637, -1e+30
          %v657 = vsel %vm652, %v638, -1e+30
          %v658 = vsel %vm652, %v639, -1e+30
          %v659 = vsel %vm652, %v640, -1e+30
          %v660 = vsel %vm652, %v641, -1e+30
          %v661 = vsel %vm652, %v642, -1e+30
          %v662 = vsel %vm652, %v643, -1e+30
          %v663 = vsel %vm652, %v644, -1e+30
          %v664 = vsel %vm652, %v645, -1e+30
          %v665 = vsel %vm652, %v646, -1e+30
          %v666 = vsel %vm652, %v647, -1e+30
          %v667 = vsel %vm652, %v648, -1e+30
          %v668 = vsel %vm652, %v649, -1e+30
          %669 = vmax.xlane.f32.xlu0 %v653
          %v670 = vpop.xlane.xlu0 %669
          %671 = vmax.xlane.f32.xlu0 %v654
          %v672 = vpop.xlane.xlu0 %671
          %673 = vmax.xlane.f32.xlu0 %v655
          %v674 = vpop.xlane.xlu0 %673
          %675 = vmax.xlane.f32.xlu0 %v656
          %v676 = vpop.xlane.xlu0 %675
          %677 = vmax.xlane.f32.xlu0 %v657
          %v678 = vpop.xlane.xlu0 %677
          %679 = vmax.xlane.f32.xlu0 %v658
          %v680 = vpop.xlane.xlu0 %679
          %681 = vmax.xlane.f32.xlu0 %v659
          %v682 = vpop.xlane.xlu0 %681
          %683 = vmax.xlane.f32.xlu0 %v660
          %v684 = vpop.xlane.xlu0 %683
          %685 = vmax.xlane.f32.xlu0 %v661
          %v686 = vpop.xlane.xlu0 %685
          %687 = vmax.xlane.f32.xlu0 %v662
          %v688 = vpop.xlane.xlu0 %687
          %689 = vmax.xlane.f32.xlu0 %v663
          %v690 = vpop.xlane.xlu0 %689
          %691 = vmax.xlane.f32.xlu0 %v664
          %v692 = vpop.xlane.xlu0 %691
          %693 = vmax.xlane.f32.xlu0 %v665
          %v694 = vpop.xlane.xlu0 %693
          %695 = vmax.xlane.f32.xlu0 %v666
          %v696 = vpop.xlane.xlu0 %695
          %697 = vmax.xlane.f32.xlu0 %v667
          %v698 = vpop.xlane.xlu0 %697
          %699 = vmax.xlane.f32.xlu0 %v668
          %v700 = vpop.xlane.xlu0 %699
          %v701 = vsub.f32 %v653, %v670
          %v702 = vsub.f32 %v654, %v672
          %v703 = vsub.f32 %v655, %v674
          %v704 = vsub.f32 %v656, %v676
          %v705 = vsub.f32 %v657, %v678
          %v706 = vsub.f32 %v658, %v680
          %v707 = vsub.f32 %v659, %v682
          %v708 = vsub.f32 %v660, %v684
          %v709 = vsub.f32 %v661, %v686
          %v710 = vsub.f32 %v662, %v688
          %v711 = vsub.f32 %v663, %v690
          %v712 = vsub.f32 %v664, %v692
          %v713 = vsub.f32 %v665, %v694
          %v714 = vsub.f32 %v666, %v696
          %v715 = vsub.f32 %v667, %v698
          %v716 = vsub.f32 %v668, %v700
          %v717 = vmul.f32 %v701, 1.442695
          %v718 = vpow.pop %v717
          %v719 = vmul.f32 %v702, 1.442695
          %v720 = vpow.pop %v719
          %v721 = vmul.f32 %v703, 1.442695
          %v722 = vpow.pop %v721
          %v723 = vmul.f32 %v704, 1.442695
          %v724 = vpow.pop %v723
          %v725 = vmul.f32 %v705, 1.442695
          %v726 = vpow.pop %v725
          %v727 = vmul.f32 %v706, 1.442695
          %v728 = vpow.pop %v727
          %v729 = vmul.f32 %v707, 1.442695
          %v730 = vpow.pop %v729
          %v731 = vmul.f32 %v708, 1.442695
          %v732 = vpow.pop %v731
          %v733 = vmul.f32 %v709, 1.442695
          %v734 = vpow.pop %v733
          %v735 = vmul.f32 %v710, 1.442695
          %v736 = vpow.pop %v735
          %v737 = vmul.f32 %v711, 1.442695
          %v738 = vpow.pop %v737
          %v739 = vmul.f32 %v712, 1.442695
          %v740 = vpow.pop %v739
          %v741 = vmul.f32 %v713, 1.442695
          %v742 = vpow.pop %v741
          %v743 = vmul.f32 %v714, 1.442695
          %v744 = vpow.pop %v743
          %v745 = vmul.f32 %v715, 1.442695
          %v746 = vpow.pop %v745
          %v747 = vmul.f32 %v716, 1.442695
          %v748 = vpow.pop %v747
          %749 = vadd.xlane.f32.xlu0 %v718
          %v750 = vpop.xlane.xlu0 %749
          %751 = vadd.xlane.f32.xlu0 %v720
          %v752 = vpop.xlane.xlu0 %751
          %753 = vadd.xlane.f32.xlu0 %v722
          %v754 = vpop.xlane.xlu0 %753
          %755 = vadd.xlane.f32.xlu0 %v724
          %v756 = vpop.xlane.xlu0 %755
          %757 = vadd.xlane.f32.xlu0 %v726
          %v758 = vpop.xlane.xlu0 %757
          %759 = vadd.xlane.f32.xlu0 %v728
          %v760 = vpop.xlane.xlu0 %759
          %761 = vadd.xlane.f32.xlu0 %v730
          %v762 = vpop.xlane.xlu0 %761
          %763 = vadd.xlane.f32.xlu0 %v732
          %v764 = vpop.xlane.xlu0 %763
          %765 = vadd.xlane.f32.xlu0 %v734
          %v766 = vpop.xlane.xlu0 %765
          %767 = vadd.xlane.f32.xlu0 %v736
          %v768 = vpop.xlane.xlu0 %767
          %769 = vadd.xlane.f32.xlu0 %v738
          %v770 = vpop.xlane.xlu0 %769
          %771 = vadd.xlane.f32.xlu0 %v740
          %v772 = vpop.xlane.xlu0 %771
          %773 = vadd.xlane.f32.xlu0 %v742
          %v774 = vpop.xlane.xlu0 %773
          %775 = vadd.xlane.f32.xlu0 %v744
          %v776 = vpop.xlane.xlu0 %775
          %777 = vadd.xlane.f32.xlu0 %v746
          %v778 = vpop.xlane.xlu0 %777
          %779 = vadd.xlane.f32.xlu0 %v748
          %v780 = vpop.xlane.xlu0 %779
          %v781 = vlog2.pop %v750
          %v782 = vmul.f32 %v781, 0.6931472
          %v783 = vlog2.pop %v752
          %v784 = vmul.f32 %v783, 0.6931472
          %v785 = vlog2.pop %v754
          %v786 = vmul.f32 %v785, 0.6931472
          %v787 = vlog2.pop %v756
          %v788 = vmul.f32 %v787, 0.6931472
          %v789 = vlog2.pop %v758
          %v790 = vmul.f32 %v789, 0.6931472
          %v791 = vlog2.pop %v760
          %v792 = vmul.f32 %v791, 0.6931472
          %v793 = vlog2.pop %v762
          %v794 = vmul.f32 %v793, 0.6931472
          %v795 = vlog2.pop %v764
          %v796 = vmul.f32 %v795, 0.6931472
          %v797 = vlog2.pop %v766
          %v798 = vmul.f32 %v797, 0.6931472
          %v799 = vlog2.pop %v768
          %v800 = vmul.f32 %v799, 0.6931472
          %v801 = vlog2.pop %v770
          %v802 = vmul.f32 %v801, 0.6931472
          %v803 = vlog2.pop %v772
          %v804 = vmul.f32 %v803, 0.6931472
          %v805 = vlog2.pop %v774
          %v806 = vmul.f32 %v805, 0.6931472
          %v807 = vlog2.pop %v776
          %v808 = vmul.f32 %v807, 0.6931472
          %v809 = vlog2.pop %v778
          %v810 = vmul.f32 %v809, 0.6931472
          %v811 = vlog2.pop %v780
          %v812 = vmul.f32 %v811, 0.6931472
          %v813 = vsub.f32 %v701, %v782
          %v814 = vsub.f32 %v702, %v784
          %v815 = vsub.f32 %v703, %v786
          %v816 = vsub.f32 %v704, %v788
          %v817 = vsub.f32 %v705, %v790
          %v818 = vsub.f32 %v706, %v792
          %v819 = vsub.f32 %v707, %v794
          %v820 = vsub.f32 %v708, %v796
          %v821 = vsub.f32 %v709, %v798
          %v822 = vsub.f32 %v710, %v800
          %v823 = vsub.f32 %v711, %v802
          %v824 = vsub.f32 %v712, %v804
          %v825 = vsub.f32 %v713, %v806
          %v826 = vsub.f32 %v714, %v808
          %v827 = vsub.f32 %v715, %v810
          %v828 = vsub.f32 %v716, %v812
          %829 = vst [vmem:[%s311] sm:$0xff] %v813
          %830 = vst [vmem:[%s311 + $0x8] sm:$0xff] %v814
          %831 = vst [vmem:[%s311 + $0x10] sm:$0xff] %v815
          %832 = vst [vmem:[%s311 + $0x18] sm:$0xff] %v816
          %833 = vst [vmem:[%s311 + $0x20] sm:$0xff] %v817
          %834 = vst [vmem:[%s311 + $0x28] sm:$0xff] %v818
          %835 = vst [vmem:[%s311 + $0x30] sm:$0xff] %v819
          %836 = vst [vmem:[%s311 + $0x38] sm:$0xff] %v820
          %837 = vst [vmem:[%s311 + $0x40] sm:$0xff] %v821
          %838 = vst [vmem:[%s311 + $0x48] sm:$0xff] %v822
          %839 = vst [vmem:[%s311 + $0x50] sm:$0xff] %v823
          %840 = vst [vmem:[%s311 + $0x58] sm:$0xff] %v824
          %841 = vst [vmem:[%s311 + $0x60] sm:$0xff] %v825
          %842 = vst [vmem:[%s311 + $0x68] sm:$0xff] %v826
          %843 = vst [vmem:[%s311 + $0x70] sm:$0xff] %v827
          %844 = vst [vmem:[%s311 + $0x78] sm:$0xff] %v828
        $region81: #{gcn_forward.5} parent=68 // pred_fallthru
          _
        %s845 = smul.u32 16, %s18
        %p846 = scmp.lt.s32.totalorder %s845, 47
        %s847 = scalar_select %p846, %s845, 47
        %s848 = smul.addr %s847, 8
        %s849 = scalar_lea.vmem %s3, %s848
        // Predicated region
        $region82: #{gcn_forward.5} parent=68 // pred_check
          %p850 = pneg %p119
        $region83: #{gcn_forward.5} parent=68 // pred_check_branch
          %852 = sbr.rel (%p850) target = $region85
        $region84: #{gcn_forward.5} parent=68 // pred_region
          %s853 = smul.u32 16, %s18
        $region85: #{gcn_forward.5} parent=68 // pred_fallthru
          _
      $region69: #{gcn_forward.5} parent=5 // pred_fallthru
        _
      %p854 = scmp.le.s32.totalorder 2, %s9
      // Predicated region
      $region86: #{gcn_forward.5} parent=5 // pred_check
        %p855 = pneg %p854
      $region87: #{gcn_forward.5} parent=5 // pred_check_branch
        %857 = sbr.rel (%p855) target = $region89
      $region88: #{gcn_forward.5} parent=5 // pred_region
        %s858 = ssub.s32 %s9, 2
        // Predicated region
        $region90: #{gcn_forward.5} parent=88 // pred_check
          %p859 = pneg %p125
        $region91: #{gcn_forward.5} parent=88 // pred_check_branch
          %861 = sbr.rel (%p859) target = $region93
        $region92: #{gcn_forward.5} parent=88 // pred_region
          %s862 = smul.u32 16, %s20
          %p863 = scmp.lt.s32.totalorder %s862, 47
          %s864 = scalar_select %p863, %s862, 47
          %s865 = smul.addr %s864, 8
          %s866 = scalar_lea.vmem %s3, %s865
        $region93: #{gcn_forward.5} parent=88 // pred_fallthru
          _
      $region89: #{gcn_forward.5} parent=5 // pred_fallthru
        _
    $region6: #{gcn_forward.5} parent=1 // loop_footer
      %s13 = sadd.s32 1, %s9
    $region7: #{gcn_forward.5} parent=1 // loop_footer_branch
      %8 = sbr.rel target = $region3
    $region8: #{gcn_forward.5} parent=1 // loop_exit
      _

// kernel: gcn_forward.4
$region0: #{gcn_forward.4}
  #allocation0 [shape = 'u32[]', space=smem, size = 0x4, offset = 0x4, fixed_abs, tag = 'smem constant byte address 0x4 - core index']
  #allocation1 [shape = 'u32[144,128]{1,0:T(1,128)}', space=vmem, size = 0x12000, scoped, tag = 'internal scratch']
  #allocation2 [shape = 'f32[128,128]{1,0:T(8,128)}', space=vmem, size = 0x10000, scoped, tag = 'scratch operand']
  %s0 = inlined_call_operand.vmem [shape: bf16[384,384], index: 0, kind: input, shape index: {}]
  %s1 = inlined_call_operand.vmem [shape: bf16[384,128], index: 1, kind: input, shape index: {}]
  %s2 = inlined_call_operand.vmem [shape: f32[1,128], index: 2, kind: input, shape index: {}]
  %s3 = inlined_call_operand.vmem [shape: bf16[128,128], index: 3, kind: input, shape index: {}]
  %s4 = inlined_call_operand.vmem [shape: bf16[384,128], index: 4, kind: output, shape index: {}]
  %s5 = sld [smem:[#allocation0]]
  $region98: #{gcn_forward.4} parent=0
    _
  %s7 = ssub.s32 1, %s5
  %s8 = scalar_select 0, %s7, %s5
  $region1: #{gcn_forward.4} parent=0
    #allocation3 [shape = 'u8[65536]{0}', space=vmem, size = 0x10000, scoped, tag = 'input window, operand 0']
    loop: start=0, step=1, limit=11
    $region2: #{gcn_forward.4} parent=1 // loop_pre_header
      _
    $region3: #{gcn_forward.4} parent=1 // loop_header
      %s10 = sphi 0, %s14
      %p11 = scmp.ge.s32.totalorder %s10, 11
      %s17 = sphi 0, %s29
      %s18 = sphi 0, %s25
      %s19 = sphi 0, %s17
      %s20 = sphi 0, %s18
      %s21 = sphi 0, %s19
      %s22 = sphi 0, %s20
      %s34 = sphi 0, %s36
      %s37 = sphi 0, %s34
      %s38 = sphi 0, %s37
      %s54 = sphi 0, %s38
      %s60 = sphi 0, %s62
      %s63 = sphi 0, %s60
      %s64 = sphi 0, %s63
      %s80 = sphi 0, %s64
      %s84 = sphi 0, %s84
      %s86 = sphi 0, %s84
      %s87 = sphi 0, %s86
      %s101 = sphi 0, %s87
      %s105 = sphi 0, %s105
      %s107 = sphi 0, %s105
      %s108 = sphi 0, %s107
      %s122 = sphi 0, %s108
      %s128 = sphi 0, %s130
      %s131 = sphi 0, %s128
      %s132 = sphi 0, %s131
      %s148 = sphi 0, %s132
    $region4: #{gcn_forward.4} parent=1 // loop_header_branch
      %13 = sbr.rel (%p11) target = $region8
    $region5: #{gcn_forward.4} parent=1 // loop_body
      %s15 = ssub.s32 %s10, 1
      %s16 = ssub.s32 %s10, 2
      %s23 = sadd.s32 1, %s18
      %p24 = scmp.ge.s32.totalorder %s23, 3
      %s25 = scalar_select %p24, 0, %s23
      %s26 = sadd.s32 1, %s17
      %s27 = scalar_select %p24, %s26, %s17
      %p28 = scmp.ge.s32.totalorder %s27, 3
      %s29 = scalar_select %p28, 0, %s27
      %s30 = ssub.s32 %s17, %s29
      %s31 = ssub.s32 %s18, %s25
      %s32 = sor.u32 %s30, %s31
      %p33 = scmp.eq.s32.totalorder %s32, 0
      %s35 = sadd.s32 %s34, 1
      %s36 = scalar_select %p33, %s34, %s35
      %p39 = pneg %p33
      %p40 = scmp.eq.s32.totalorder %s10, 8
      %p41 = por %p39, %p40
      %p42 = scmp.ne.s32.totalorder %s34, %s37
      %p43 = scmp.eq.s32.totalorder %s10, 0
      %p44 = por %p42, %p43
      %p45 = scmp.ne.s32.totalorder %s34, %s37
      %p46 = scmp.eq.s32.totalorder %s15, 8
      %p47 = por %p45, %p46
      %p48 = scmp.ne.s32.totalorder %s37, %s38
      %p49 = scmp.eq.s32.totalorder %s15, 0
      %p50 = por %p48, %p49
      %p51 = scmp.ne.s32.totalorder %s37, %s38
      %p52 = scmp.eq.s32.totalorder %s16, 8
      %p53 = por %p51, %p52
      %p55 = scmp.ne.s32.totalorder %s38, %s54
      %p56 = scmp.eq.s32.totalorder %s16, 0
      %p57 = por %p55, %p56
      %s58 = ssub.s32 %s18, %s25
      %p59 = scmp.eq.s32.totalorder %s58, 0
      %s61 = sadd.s32 %s60, 1
      %s62 = scalar_select %p59, %s60, %s61
      %p65 = pneg %p59
      %p66 = scmp.eq.s32.totalorder %s10, 8
      %p67 = por %p65, %p66
      %p68 = scmp.ne.s32.totalorder %s60, %s63
      %p69 = scmp.eq.s32.totalorder %s10, 0
      %p70 = por %p68, %p69
      %p71 = scmp.ne.s32.totalorder %s60, %s63
      %p72 = scmp.eq.s32.totalorder %s15, 8
      %p73 = por %p71, %p72
      %p74 = scmp.ne.s32.totalorder %s63, %s64
      %p75 = scmp.eq.s32.totalorder %s15, 0
      %p76 = por %p74, %p75
      %p77 = scmp.ne.s32.totalorder %s63, %s64
      %p78 = scmp.eq.s32.totalorder %s16, 8
      %p79 = por %p77, %p78
      %p81 = scmp.ne.s32.totalorder %s64, %s80
      %p82 = scmp.eq.s32.totalorder %s16, 0
      %p83 = por %p81, %p82
      %s85 = sadd.s32 %s84, 1
      %p88 = scmp.eq.s32.totalorder %s10, 8
      %p89 = scmp.ne.s32.totalorder %s84, %s86
      %p90 = scmp.eq.s32.totalorder %s10, 0
      %p91 = por %p89, %p90
      %p92 = scmp.ne.s32.totalorder %s84, %s86
      %p93 = scmp.eq.s32.totalorder %s15, 8
      %p94 = por %p92, %p93
      %p95 = scmp.ne.s32.totalorder %s86, %s87
      %p96 = scmp.eq.s32.totalorder %s15, 0
      %p97 = por %p95, %p96
      %p98 = scmp.ne.s32.totalorder %s86, %s87
      %p99 = scmp.eq.s32.totalorder %s16, 8
      %p100 = por %p98, %p99
      %p102 = scmp.ne.s32.totalorder %s87, %s101
      %p103 = scmp.eq.s32.totalorder %s16, 0
      %p104 = por %p102, %p103
      %s106 = sadd.s32 %s105, 1
      %p109 = scmp.eq.s32.totalorder %s10, 8
      %p110 = scmp.ne.s32.totalorder %s105, %s107
      %p111 = scmp.eq.s32.totalorder %s10, 0
      %p112 = por %p110, %p111
      %p113 = scmp.ne.s32.totalorder %s105, %s107
      %p114 = scmp.eq.s32.totalorder %s15, 8
      %p115 = por %p113, %p114
      %p116 = scmp.ne.s32.totalorder %s107, %s108
      %p117 = scmp.eq.s32.totalorder %s15, 0
      %p118 = por %p116, %p117
      %p119 = scmp.ne.s32.totalorder %s107, %s108
      %p120 = scmp.eq.s32.totalorder %s16, 8
      %p121 = por %p119, %p120
      %p123 = scmp.ne.s32.totalorder %s108, %s122
      %p124 = scmp.eq.s32.totalorder %s16, 0
      %p125 = por %p123, %p124
      %s126 = ssub.s32 %s17, %s29
      %p127 = scmp.eq.s32.totalorder %s126, 0
      %s129 = sadd.s32 %s128, 1
      %s130 = scalar_select %p127, %s128, %s129
      %p133 = pneg %p127
      %p134 = scmp.eq.s32.totalorder %s10, 8
      %p135 = por %p133, %p134
      %p136 = scmp.ne.s32.totalorder %s128, %s131
      %p137 = scmp.eq.s32.totalorder %s10, 0
      %p138 = por %p136, %p137
      %p139 = scmp.ne.s32.totalorder %s128, %s131
      %p140 = scmp.eq.s32.totalorder %s15, 8
      %p141 = por %p139, %p140
      %p142 = scmp.ne.s32.totalorder %s131, %s132
      %p143 = scmp.eq.s32.totalorder %s15, 0
      %p144 = por %p142, %p143
      %p145 = scmp.ne.s32.totalorder %s131, %s132
      %p146 = scmp.eq.s32.totalorder %s16, 8
      %p147 = por %p145, %p146
      %p149 = scmp.ne.s32.totalorder %s132, %s148
      %p150 = scmp.eq.s32.totalorder %s16, 0
      %p151 = por %p149, %p150
      %p152 = scmp.le.s32.totalorder 1, %s10
      %p153 = scmp.lt.s32.totalorder %s10, 10
      %p154 = pnand %p152, %p153
      %p155 = pneg %p154
      // Predicated region
      $region9: #{gcn_forward.4} parent=5 // pred_check
        _
      $region10: #{gcn_forward.4} parent=5 // pred_check_branch
        %157 = sbr.rel (%p154) target = $region12
      $region11: #{gcn_forward.4} parent=5 // pred_region
        %s158 = ssub.s32 %s10, 1
        // Predicated region
        $region13: #{gcn_forward.4} parent=11 // pred_check
          %p159 = pneg %p97
        $region14: #{gcn_forward.4} parent=11 // pred_check_branch
          %161 = sbr.rel (%p159) target = $region16
        $region15: #{gcn_forward.4} parent=11 // pred_region
          _
        $region16: #{gcn_forward.4} parent=11 // pred_fallthru
          _
        // Predicated region
        $region17: #{gcn_forward.4} parent=11 // pred_check
          %p162 = pneg %p118
        $region18: #{gcn_forward.4} parent=11 // pred_check_branch
          %164 = sbr.rel (%p162) target = $region20
        $region19: #{gcn_forward.4} parent=11 // pred_region
          _
        $region20: #{gcn_forward.4} parent=11 // pred_fallthru
          _
      $region12: #{gcn_forward.4} parent=5 // pred_fallthru
        _
      %p165 = scmp.lt.s32.totalorder %s10, 9
      // Predicated region
      $region21: #{gcn_forward.4} parent=5 // pred_check
        %p166 = pneg %p165
      $region22: #{gcn_forward.4} parent=5 // pred_check_branch
        %168 = sbr.rel (%p166) target = $region24
      $region23: #{gcn_forward.4} parent=5 // pred_region
        // Predicated region
        $region25: #{gcn_forward.4} parent=23 // pred_check
          %p169 = pneg %p44
        $region26: #{gcn_forward.4} parent=23 // pred_check_branch
          %171 = sbr.rel (%p169) target = $region28
        $region27: #{gcn_forward.4} parent=23 // pred_region
          %s172 = sand.u32 %s34, 1
          %s173 = sand.u32 %s34, 1
          %s174 = smul.addr %s173, 64
          %s175 = scalar_lea.vmem [#allocation3], %s174
          %s176 = smul.u32 16, %s17
          %s177 = smul.addr %s176, 3
          %s178 = sadd.s32 %s18, %s177
          %s179 = smul.addr %s178, 4
          %s180 = scalar_lea.vmem %s0, %s179
          // Predicated region
          $region29: #{gcn_forward.4} parent=27 // pred_check
            _
          $region30: #{gcn_forward.4} parent=27 // pred_check_branch
            %182 = sbr.rel (0) target = $region32
          $region31: #{gcn_forward.4} parent=27 // pred_region
            // Predicated region
            $region33: #{gcn_forward.4} parent=31 // pred_check
              _
            $region34: #{gcn_forward.4} parent=31 // pred_check_branch
              %184 = sbr.rel target = $region36
            $region35: #{gcn_forward.4} parent=31 // pred_region
              // Predicated region
              $region48: #{gcn_forward.4} parent=35 // pred_check
                _
              $region49: #{gcn_forward.4} parent=35 // pred_check_branch
                %229 = sbr.rel (0) target = $region51
              $region50: #{gcn_forward.4} parent=35 // pred_region
                loop: start=0, step=1, limit=1
                $region52: #{gcn_forward.4} parent=50 // loop_pre_header
                  _
                $region53: #{gcn_forward.4} parent=50 // loop_header
                  %s231 = sphi 0, %s235
                  %p232 = scmp.ge.s32.totalorder %s231, 1
                  %s236 = sphi %s180, %s180
                  %s237 = sphi %s175, %s175
                $region54: #{gcn_forward.4} parent=50 // loop_header_branch
                  %234 = sbr.rel (%p232) target = $region58
                $region55: #{gcn_forward.4} parent=50 // loop_body
                  _
                $region56: #{gcn_forward.4} parent=50 // loop_footer
                  %s235 = sadd.s32 1, %s231
                $region57: #{gcn_forward.4} parent=50 // loop_footer_branch
                  %230 = sbr.rel target = $region53
                $region58: #{gcn_forward.4} parent=50 // loop_exit
                  _
                loop: start=0, step=1, limit=1
                $region59: #{gcn_forward.4} parent=50 // loop_pre_header
                  _
                $region60: #{gcn_forward.4} parent=50 // loop_header
                  %s240 = sphi 0, %s244
                  %p241 = scmp.ge.s32.totalorder %s240, 1
                  %s245 = sphi %s180, %s180
                  %s246 = sphi %s175, %s175
                $region61: #{gcn_forward.4} parent=50 // loop_header_branch
                  %243 = sbr.rel (%p241) target = $region65
                $region62: #{gcn_forward.4} parent=50 // loop_body
                  %v247 = vld [vmem:[%s245] sm:$0xf]
                  %248 = vst [vmem:[%s246] sm:$0xf] %v247
                  %v249 = vld [vmem:[%s245 + $0xc] sm:$0xf]
                  %250 = vst [vmem:[%s246 + $0x4] sm:$0xf] %v249
                  %v251 = vld [vmem:[%s245 + $0x18] sm:$0xf]
                  %252 = vst [vmem:[%s246 + $0x8] sm:$0xf] %v251
                  %v253 = vld [vmem:[%s245 + $0x24] sm:$0xf]
                  %254 = vst [vmem:[%s246 + $0xc] sm:$0xf] %v253
                  %v255 = vld [vmem:[%s245 + $0x30] sm:$0xf]
                  %256 = vst [vmem:[%s246 + $0x10] sm:$0xf] %v255
                  %v257 = vld [vmem:[%s245 + $0x3c] sm:$0xf]
                  %258 = vst [vmem:[%s246 + $0x14] sm:$0xf] %v257
                  %v259 = vld [vmem:[%s245 + $0x48] sm:$0xf]
                  %260 = vst [vmem:[%s246 + $0x18] sm:$0xf] %v259
                  %v261 = vld [vmem:[%s245 + $0x54] sm:$0xf]
                  %262 = vst [vmem:[%s246 + $0x1c] sm:$0xf] %v261
                  %v263 = vld [vmem:[%s245 + $0x60] sm:$0xf]
                  %264 = vst [vmem:[%s246 + $0x20] sm:$0xf] %v263
                  %v265 = vld [vmem:[%s245 + $0x6c] sm:$0xf]
                  %266 = vst [vmem:[%s246 + $0x24] sm:$0xf] %v265
                  %v267 = vld [vmem:[%s245 + $0x78] sm:$0xf]
                  %268 = vst [vmem:[%s246 + $0x28] sm:$0xf] %v267
                  %v269 = vld [vmem:[%s245 + $0x84] sm:$0xf]
                  %270 = vst [vmem:[%s246 + $0x2c] sm:$0xf] %v269
                  %v271 = vld [vmem:[%s245 + $0x90] sm:$0xf]
                  %272 = vst [vmem:[%s246 + $0x30] sm:$0xf] %v271
                  %v273 = vld [vmem:[%s245 + $0x9c] sm:$0xf]
                  %274 = vst [vmem:[%s246 + $0x34] sm:$0xf] %v273
                  %v275 = vld [vmem:[%s245 + $0xa8] sm:$0xf]
                  %276 = vst [vmem:[%s246 + $0x38] sm:$0xf] %v275
                  %v277 = vld [vmem:[%s245 + $0xb4] sm:$0xf]
                  %278 = vst [vmem:[%s246 + $0x3c] sm:$0xf] %v277
                $region63: #{gcn_forward.4} parent=50 // loop_footer
                  %s244 = sadd.s32 1, %s240
                $region64: #{gcn_forward.4} parent=50 // loop_footer_branch
                  %239 = sbr.rel target = $region60
                $region65: #{gcn_forward.4} parent=50 // loop_exit
                  _
              $region51: #{gcn_forward.4} parent=35 // pred_fallthru
                _
            $region36: #{gcn_forward.4} parent=31 // pred_fallthru
              _
            // Predicated region
            $region37: #{gcn_forward.4} parent=31 // pred_check
              _
            $region38: #{gcn_forward.4} parent=31 // pred_check_branch
              %186 = sbr.rel (0) target = $region40
            $region39: #{gcn_forward.4} parent=31 // pred_region
              loop: start=0, step=1, limit=1
              $region41: #{gcn_forward.4} parent=39 // loop_pre_header
                _
              $region42: #{gcn_forward.4} parent=39 // loop_header
                %s189 = sphi 0, %s193
                %p190 = scmp.ge.s32.totalorder %s189, 1
                %s194 = sphi %s180, %s180
                %s195 = sphi %s175, %s175
              $region43: #{gcn_forward.4} parent=39 // loop_header_branch
                %192 = sbr.rel (%p190) target = $region47
              $region44: #{gcn_forward.4} parent=39 // loop_body
                %v196 = vld [vmem:[%s194] sm:$0xf]
                %197 = vst [vmem:[%s195] sm:$0xf] %v196
                %v198 = vld [vmem:[%s194 + $0xc] sm:$0xf]
                %199 = vst [vmem:[%s195 + $0x4] sm:$0xf] %v198
                %v200 = vld [vmem:[%s194 + $0x18] sm:$0xf]
                %201 = vst [vmem:[%s195 + $0x8] sm:$0xf] %v200
                %v202 = vld [vmem:[%s194 + $0x24] sm:$0xf]
                %203 = vst [vmem:[%s195 + $0xc] sm:$0xf] %v202
                %v204 = vld [vmem:[%s194 + $0x30] sm:$0xf]
                %205 = vst [vmem:[%s195 + $0x10] sm:$0xf] %v204
                %v206 = vld [vmem:[%s194 + $0x3c] sm:$0xf]
                %207 = vst [vmem:[%s195 + $0x14] sm:$0xf] %v206
                %v208 = vld [vmem:[%s194 + $0x48] sm:$0xf]
                %209 = vst [vmem:[%s195 + $0x18] sm:$0xf] %v208
                %v210 = vld [vmem:[%s194 + $0x54] sm:$0xf]
                %211 = vst [vmem:[%s195 + $0x1c] sm:$0xf] %v210
                %v212 = vld [vmem:[%s194 + $0x60] sm:$0xf]
                %213 = vst [vmem:[%s195 + $0x20] sm:$0xf] %v212
                %v214 = vld [vmem:[%s194 + $0x6c] sm:$0xf]
                %215 = vst [vmem:[%s195 + $0x24] sm:$0xf] %v214
                %v216 = vld [vmem:[%s194 + $0x78] sm:$0xf]
                %217 = vst [vmem:[%s195 + $0x28] sm:$0xf] %v216
                %v218 = vld [vmem:[%s194 + $0x84] sm:$0xf]
                %219 = vst [vmem:[%s195 + $0x2c] sm:$0xf] %v218
                %v220 = vld [vmem:[%s194 + $0x90] sm:$0xf]
                %221 = vst [vmem:[%s195 + $0x30] sm:$0xf] %v220
                %v222 = vld [vmem:[%s194 + $0x9c] sm:$0xf]
                %223 = vst [vmem:[%s195 + $0x34] sm:$0xf] %v222
                %v224 = vld [vmem:[%s194 + $0xa8] sm:$0xf]
                %225 = vst [vmem:[%s195 + $0x38] sm:$0xf] %v224
                %v226 = vld [vmem:[%s194 + $0xb4] sm:$0xf]
                %227 = vst [vmem:[%s195 + $0x3c] sm:$0xf] %v226
              $region45: #{gcn_forward.4} parent=39 // loop_footer
                %s193 = sadd.s32 1, %s189
              $region46: #{gcn_forward.4} parent=39 // loop_footer_branch
                %188 = sbr.rel target = $region42
              $region47: #{gcn_forward.4} parent=39 // loop_exit
                _
            $region40: #{gcn_forward.4} parent=31 // pred_fallthru
              _
          $region32: #{gcn_forward.4} parent=27 // pred_fallthru
            _
          %279 = vnop
        $region28: #{gcn_forward.4} parent=23 // pred_fallthru
          _
        // Predicated region
        $region66: #{gcn_forward.4} parent=23 // pred_check
          %p280 = pneg %p70
        $region67: #{gcn_forward.4} parent=23 // pred_check_branch
          %282 = sbr.rel (%p280) target = $region69
        $region68: #{gcn_forward.4} parent=23 // pred_region
          %s283 = smul.u32 16, %s18
          %p284 = scmp.lt.s32.totalorder %s283, 47
          %s285 = scalar_select %p284, %s283, 47
          %s286 = smul.addr %s285, 4
          %s287 = scalar_lea.vmem %s1, %s286
          %s288 = smul.u32 16, %s18
        $region69: #{gcn_forward.4} parent=23 // pred_fallthru
          _
      $region24: #{gcn_forward.4} parent=5 // pred_fallthru
        _
      %p289 = scmp.le.s32.totalorder 1, %s10
      %p290 = scmp.lt.s32.totalorder %s10, 10
      %p291 = pnand %p289, %p290
      %p292 = pneg %p291
      // Predicated region
      $region70: #{gcn_forward.4} parent=5 // pred_check
        _
      $region71: #{gcn_forward.4} parent=5 // pred_check_branch
        %294 = sbr.rel (%p291) target = $region73
      $region72: #{gcn_forward.4} parent=5 // pred_region
        %s295 = ssub.s32 %s10, 1
        %s296 = sand.u32 %s37, 1
        %s297 = sand.u32 %s37, 1
        %s298 = smul.addr %s297, 64
        %s299 = scalar_lea.vmem [#allocation3], %s298
        // Predicated region
        $region74: #{gcn_forward.4} parent=72 // pred_check
          %p300 = pneg %p50
        $region75: #{gcn_forward.4} parent=72 // pred_check_branch
          %302 = sbr.rel (%p300) target = $region77
        $region76: #{gcn_forward.4} parent=72 // pred_region
          _
        $region77: #{gcn_forward.4} parent=72 // pred_fallthru
          _
        %s303 = sand.u32 %s37, 1
        %s304 = sand.u32 %s37, 1
        %s305 = smul.addr %s304, 64
        %s306 = scalar_lea.vmem [#allocation3], %s305
        %p307 = pneg %p50
        %p308 = pneg %p47
        %s309 = smul.u32 16, %s20
        %p310 = scmp.lt.s32.totalorder %s309, 47
        %s311 = scalar_select %p310, %s309, 47
        %s312 = smul.addr %s311, 4
        %s313 = scalar_lea.vmem %s1, %s312
        %p314 = pneg %p76
        %p315 = pneg %p73
        %p316 = pneg %p97
        %p317 = pneg %p94
        %p318 = pneg %p118
        %p319 = pneg %p115
        %p320 = pneg %p144
        %p321 = pneg %p141
        %s322 = smul.u32 16, %s19
        %p323 = scmp.lt.s32.totalorder %s322, 47
        %s324 = scalar_select %p323, %s322, 47
        %s325 = smul.addr %s324, 4
        %s326 = scalar_lea.vmem %s4, %s325
        %s327 = smul.u32 16, %s19
        %s328 = smul.u32 16, %s20
        %p329 = scmp.lt.s32.totalorder %s328, 47
        %s330 = scalar_select %p329, %s328, 47
        %s331 = smul.addr %s330, 4
        %s332 = scalar_lea.vmem %s1, %s331
        %s333 = smul.u32 16, %s20
        %s334 = smul.u32 16, %s19
        %p335 = scmp.lt.s32.totalorder %s334, 47
        %s336 = scalar_select %p335, %s334, 47
        %s337 = smul.addr %s336, 4
        %s338 = scalar_lea.vmem %s4, %s337
        %s339 = smul.u32 16, %s19
        %p341 = scmp.eq.s32.totalorder %s20, 0
        // Predicated region
        $region78: #{gcn_forward.4} parent=72 // pred_check
          %p342 = pneg %p341
        $region79: #{gcn_forward.4} parent=72 // pred_check_branch
          %344 = sbr.rel (%p342) target = $region81
        $region80: #{gcn_forward.4} parent=72 // pred_region
          %345 = vst [vmem:[#allocation2] sm:$0xff] 0.0
          %346 = vst [vmem:[#allocation2 + $0x8] sm:$0xff] 0.0
          %347 = vst [vmem:[#allocation2 + $0x10] sm:$0xff] 0.0
          %348 = vst [vmem:[#allocation2 + $0x18] sm:$0xff] 0.0
          %349 = vst [vmem:[#allocation2 + $0x20] sm:$0xff] 0.0
          %350 = vst [vmem:[#allocation2 + $0x28] sm:$0xff] 0.0
          %351 = vst [vmem:[#allocation2 + $0x30] sm:$0xff] 0.0
          %352 = vst [vmem:[#allocation2 + $0x38] sm:$0xff] 0.0
          %353 = vst [vmem:[#allocation2 + $0x40] sm:$0xff] 0.0
          %354 = vst [vmem:[#allocation2 + $0x48] sm:$0xff] 0.0
          %355 = vst [vmem:[#allocation2 + $0x50] sm:$0xff] 0.0
          %356 = vst [vmem:[#allocation2 + $0x58] sm:$0xff] 0.0
          %357 = vst [vmem:[#allocation2 + $0x60] sm:$0xff] 0.0
          %358 = vst [vmem:[#allocation2 + $0x68] sm:$0xff] 0.0
          %359 = vst [vmem:[#allocation2 + $0x70] sm:$0xff] 0.0
          %360 = vst [vmem:[#allocation2 + $0x78] sm:$0xff] 0.0
        $region81: #{gcn_forward.4} parent=72 // pred_fallthru
          _
        %v361 = vld [vmem:[#allocation2] sm:$0xff]
        %v362 = vld [vmem:[#allocation2 + $0x8] sm:$0xff]
        %v363 = vld [vmem:[#allocation2 + $0x10] sm:$0xff]
        %v364 = vld [vmem:[#allocation2 + $0x18] sm:$0xff]
        %v365 = vld [vmem:[#allocation2 + $0x20] sm:$0xff]
        %v366 = vld [vmem:[#allocation2 + $0x28] sm:$0xff]
        %v367 = vld [vmem:[#allocation2 + $0x30] sm:$0xff]
        %v368 = vld [vmem:[#allocation2 + $0x38] sm:$0xff]
        %v369 = vld [vmem:[#allocation2 + $0x40] sm:$0xff]
        %v370 = vld [vmem:[#allocation2 + $0x48] sm:$0xff]
        %v371 = vld [vmem:[#allocation2 + $0x50] sm:$0xff]
        %v372 = vld [vmem:[#allocation2 + $0x58] sm:$0xff]
        %v373 = vld [vmem:[#allocation2 + $0x60] sm:$0xff]
        %v374 = vld [vmem:[#allocation2 + $0x68] sm:$0xff]
        %v375 = vld [vmem:[#allocation2 + $0x70] sm:$0xff]
        %v376 = vld [vmem:[#allocation2 + $0x78] sm:$0xff]
        %v377 = vld [vmem:[%s299] sm:$0xf]
        %v378 = vld [vmem:[%s299 + $0x4] sm:$0xf]
        %v379 = vld [vmem:[%s299 + $0x8] sm:$0xf]
        %v380 = vld [vmem:[%s299 + $0xc] sm:$0xf]
        %v381 = vld [vmem:[%s299 + $0x10] sm:$0xf]
        %v382 = vld [vmem:[%s299 + $0x14] sm:$0xf]
        %v383 = vld [vmem:[%s299 + $0x18] sm:$0xf]
        %v384 = vld [vmem:[%s299 + $0x1c] sm:$0xf]
        %v385 = vld [vmem:[%s299 + $0x20] sm:$0xf]
        %v386 = vld [vmem:[%s299 + $0x24] sm:$0xf]
        %v387 = vld [vmem:[%s299 + $0x28] sm:$0xf]
        %v388 = vld [vmem:[%s299 + $0x2c] sm:$0xf]
        %v389 = vld [vmem:[%s299 + $0x30] sm:$0xf]
        %v390 = vld [vmem:[%s299 + $0x34] sm:$0xf]
        %v391 = vld [vmem:[%s299 + $0x38] sm:$0xf]
        %v392 = vld [vmem:[%s299 + $0x3c] sm:$0xf]
        %v393 = vld [vmem:[%s332] sm:$0xf]
        %v394 = vld [vmem:[%s332 + $0x4] sm:$0xf]
        %v395 = vld [vmem:[%s332 + $0x8] sm:$0xf]
        %v396 = vld [vmem:[%s332 + $0xc] sm:$0xf]
        %v397 = vld [vmem:[%s332 + $0x10] sm:$0xf]
        %v398 = vld [vmem:[%s332 + $0x14] sm:$0xf]
        %v399 = vld [vmem:[%s332 + $0x18] sm:$0xf]
        %v400 = vld [vmem:[%s332 + $0x1c] sm:$0xf]
        %v401 = vld [vmem:[%s332 + $0x20] sm:$0xf]
        %v402 = vld [vmem:[%s332 + $0x24] sm:$0xf]
        %v403 = vld [vmem:[%s332 + $0x28] sm:$0xf]
        %v404 = vld [vmem:[%s332 + $0x2c] sm:$0xf]
        %v405 = vld [vmem:[%s332 + $0x30] sm:$0xf]
        %v406 = vld [vmem:[%s332 + $0x34] sm:$0xf]
        %v407 = vld [vmem:[%s332 + $0x38] sm:$0xf]
        %v408 = vld [vmem:[%s332 + $0x3c] sm:$0xf]
        %v425 = vunpack.c.l.b16 %v377
        %v426 = vunpack.c.l.b16 %v378
        %v427 = vunpack.c.l.b16 %v379
        %v428 = vunpack.c.l.b16 %v380
        %v429 = vunpack.c.l.b16 %v381
        %v430 = vunpack.c.l.b16 %v382
        %v431 = vunpack.c.l.b16 %v383
        %v432 = vunpack.c.l.b16 %v384
        %v433 = vunpack.c.l.b16 %v385
        %v434 = vunpack.c.l.b16 %v386
        %v435 = vunpack.c.l.b16 %v387
        %v436 = vunpack.c.l.b16 %v388
        %v437 = vunpack.c.l.b16 %v389
        %v438 = vunpack.c.l.b16 %v390
        %v439 = vunpack.c.l.b16 %v391
        %v440 = vunpack.c.l.b16 %v392
        %v441 = vpack.c.b16 %v426, %v425
        %v442 = vpack.c.b16 %v428, %v427
        %v443 = vpack.c.b16 %v430, %v429
        %v444 = vpack.c.b16 %v432, %v431
        %v445 = vpack.c.b16 %v434, %v433
        %v446 = vpack.c.b16 %v436, %v435
        %v447 = vpack.c.b16 %v438, %v437
        %v448 = vpack.c.b16 %v440, %v439
        %v473 = vunpack.c.l.b16 %v393
        %v474 = vunpack.c.l.b16 %v394
        %v475 = vunpack.c.l.b16 %v395
        %v476 = vunpack.c.l.b16 %v396
        %v477 = vunpack.c.l.b16 %v397
        %v478 = vunpack.c.l.b16 %v398
        %v479 = vunpack.c.l.b16 %v399
        %v480 = vunpack.c.l.b16 %v400
        %v481 = vunpack.c.l.b16 %v401
        %v482 = vunpack.c.l.b16 %v402
        %v483 = vunpack.c.l.b16 %v403
        %v484 = vunpack.c.l.b16 %v404
        %v485 = vunpack.c.l.b16 %v405
        %v486 = vunpack.c.l.b16 %v406
        %v487 = vunpack.c.l.b16 %v407
        %v488 = vunpack.c.l.b16 %v408
        %v489 = vpack.c.b16 %v474, %v473
        %v490 = vpack.c.b16 %v476, %v475
        %v491 = vpack.c.b16 %v478, %v477
        %v492 = vpack.c.b16 %v480, %v479
        %v493 = vpack.c.b16 %v482, %v481
        %v494 = vpack.c.b16 %v484, %v483
        %v495 = vpack.c.b16 %v486, %v485
        %v496 = vpack.c.b16 %v488, %v487
        %505 = vmatprep.subr.bf16.mxu0 0
        %506 = vmatpush1.bf16.msra.mxu0 %v489
        %507 = vmatprep.subr.bf16.mxu0 0
        %508 = vmatpush1.bf16.msra.mxu0 %v490
        %509 = vmatprep.subr.bf16.mxu0 0
        %510 = vmatpush1.bf16.msra.mxu0 %v491
        %511 = vmatprep.subr.bf16.mxu0 0
        %512 = vmatpush1.bf16.msra.mxu0 %v492
        %513 = vmatprep.subr.bf16.mxu0 0
        %514 = vmatpush1.bf16.msra.mxu0 %v493
        %515 = vmatprep.subr.bf16.mxu0 0
        %516 = vmatpush1.bf16.msra.mxu0 %v494
        %517 = vmatprep.subr.bf16.mxu0 0
        %518 = vmatpush1.bf16.msra.mxu0 %v495
        %519 = vmatprep.subr.bf16.mxu0 0
        %520 = vmatpush1.bf16.msra.mxu0 %v496
        %521 = vmatprep.subr.bf16.mxu0 0
        %522 = vmatpush1.bf16.msra.mxu0 0
        %523 = vmatprep.subr.bf16.mxu0 0
        %524 = vmatpush1.bf16.msra.mxu0 0
        %525 = vmatprep.subr.bf16.mxu0 0
        %526 = vmatpush1.bf16.msra.mxu0 0
        %527 = vmatprep.subr.bf16.mxu0 0
        %528 = vmatpush1.bf16.msra.mxu0 0
        %529 = vmatprep.subr.bf16.mxu0 0
        %530 = vmatpush1.bf16.msra.mxu0 0
        %531 = vmatprep.subr.bf16.mxu0 0
        %532 = vmatpush1.bf16.msra.mxu0 0
        %533 = vmatprep.subr.bf16.mxu0 0
        %534 = vmatpush1.bf16.msra.mxu0 0
        %535 = vmatprep.subr.bf16.mxu0 0
        %536 = vmatpush1.bf16.msra.mxu0 0
        %537 = vmatprep.mubr.bf16.mxu0 0
        %538 = vmatmul.mubr.bf16.gmra.mrb[0].mxu0 %v441
        %v539 = vpop.f32.mrb[0].mxu0
        %v540 = vadd.f32 0.0, %v539
        %v541 = vpop.f32.mrb[0].mxu0
        %v542 = vpop.f32.mrb[0].mxu0
        %v543 = vadd.f32 0.0, %v542
        %v544 = vpop.f32.mrb[0].mxu0
        %545 = vmatprep.mubr.bf16.mxu0 0
        %546 = vmatmul.mubr.bf16.gmra.mrb[0].mxu0 %v442
        %v547 = vpop.f32.mrb[0].mxu0
        %v548 = vadd.f32 0.0, %v547
        %v549 = vpop.f32.mrb[0].mxu0
        %v550 = vpop.f32.mrb[0].mxu0
        %v551 = vadd.f32 0.0, %v550
        %v552 = vpop.f32.mrb[0].mxu0
        %553 = vmatprep.mubr.bf16.mxu0 0
        %554 = vmatmul.mubr.bf16.gmra.mrb[0].mxu0 %v443
        %v555 = vpop.f32.mrb[0].mxu0
        %v556 = vadd.f32 0.0, %v555
        %v557 = vpop.f32.mrb[0].mxu0
        %v558 = vpop.f32.mrb[0].mxu0
        %v559 = vadd.f32 0.0, %v558
        %v560 = vpop.f32.mrb[0].mxu0
        %561 = vmatprep.mubr.bf16.mxu0 0
        %562 = vmatmul.mubr.bf16.gmra.mrb[0].mxu0 %v444
        %v563 = vpop.f32.mrb[0].mxu0
        %v564 = vadd.f32 0.0, %v563
        %v565 = vpop.f32.mrb[0].mxu0
        %v566 = vpop.f32.mrb[0].mxu0
        %v567 = vadd.f32 0.0, %v566
        %v568 = vpop.f32.mrb[0].mxu0
        %569 = vmatprep.mubr.bf16.mxu0 0
        %570 = vmatmul.mubr.bf16.gmra.mrb[0].mxu0 %v445
        %v571 = vpop.f32.mrb[0].mxu0
        %v572 = vadd.f32 0.0, %v571
        %v573 = vpop.f32.mrb[0].mxu0
        %v574 = vpop.f32.mrb[0].mxu0
        %v575 = vadd.f32 0.0, %v574
        %v576 = vpop.f32.mrb[0].mxu0
        %577 = vmatprep.mubr.bf16.mxu0 0
        %578 = vmatmul.mubr.bf16.gmra.mrb[0].mxu0 %v446
        %v579 = vpop.f32.mrb[0].mxu0
        %v580 = vadd.f32 0.0, %v579
        %v581 = vpop.f32.mrb[0].mxu0
        %v582 = vpop.f32.mrb[0].mxu0
        %v583 = vadd.f32 0.0, %v582
        %v584 = vpop.f32.mrb[0].mxu0
        %585 = vmatprep.mubr.bf16.mxu0 0
        %586 = vmatmul.mubr.bf16.gmra.mrb[0].mxu0 %v447
        %v587 = vpop.f32.mrb[0].mxu0
        %v588 = vadd.f32 0.0, %v587
        %v589 = vpop.f32.mrb[0].mxu0
        %v590 = vpop.f32.mrb[0].mxu0
        %v591 = vadd.f32 0.0, %v590
        %v592 = vpop.f32.mrb[0].mxu0
        %593 = vmatprep.mubr.bf16.mxu0 0
        %594 = vmatmul.mubr.bf16.gmra.mrb[0].mxu0 %v448
        %v595 = vpop.f32.mrb[0].mxu0
        %v596 = vadd.f32 0.0, %v595
        %v597 = vpop.f32.mrb[0].mxu0
        %v598 = vpop.f32.mrb[0].mxu0
        %v599 = vadd.f32 0.0, %v598
        %v600 = vpop.f32.mrb[0].mxu0
        %601 = vdwg.mxu0
        %v602 = vadd.f32 %v361, %v540
        %v603 = vadd.f32 %v362, %v543
        %v604 = vadd.f32 %v363, %v548
        %v605 = vadd.f32 %v364, %v551
        %v606 = vadd.f32 %v365, %v556
        %v607 = vadd.f32 %v366, %v559
        %v608 = vadd.f32 %v367, %v564
        %v609 = vadd.f32 %v368, %v567
        %v610 = vadd.f32 %v369, %v572
        %v611 = vadd.f32 %v370, %v575
        %v612 = vadd.f32 %v371, %v580
        %v613 = vadd.f32 %v372, %v583
        %v614 = vadd.f32 %v373, %v588
        %v615 = vadd.f32 %v374, %v591
        %v616 = vadd.f32 %v375, %v596
        %v617 = vadd.f32 %v376, %v599
        %618 = vst [vmem:[#allocation2] sm:$0xff] %v602
        %619 = vst [vmem:[#allocation2 + $0x8] sm:$0xff] %v603
        %620 = vst [vmem:[#allocation2 + $0x10] sm:$0xff] %v604
        %621 = vst [vmem:[#allocation2 + $0x18] sm:$0xff] %v605
        %622 = vst [vmem:[#allocation2 + $0x20] sm:$0xff] %v606
        %623 = vst [vmem:[#allocation2 + $0x28] sm:$0xff] %v607
        %624 = vst [vmem:[#allocation2 + $0x30] sm:$0xff] %v608
        %625 = vst [vmem:[#allocation2 + $0x38] sm:$0xff] %v609
        %626 = vst [vmem:[#allocation2 + $0x40] sm:$0xff] %v610
        %627 = vst [vmem:[#allocation2 + $0x48] sm:$0xff] %v611
        %628 = vst [vmem:[#allocation2 + $0x50] sm:$0xff] %v612
        %629 = vst [vmem:[#allocation2 + $0x58] sm:$0xff] %v613
        %630 = vst [vmem:[#allocation2 + $0x60] sm:$0xff] %v614
        %631 = vst [vmem:[#allocation2 + $0x68] sm:$0xff] %v615
        %632 = vst [vmem:[#allocation2 + $0x70] sm:$0xff] %v616
        %633 = vst [vmem:[#allocation2 + $0x78] sm:$0xff] %v617
        %p634 = scmp.eq.s32.totalorder %s20, 2
        // Predicated region
        $region82: #{gcn_forward.4} parent=72 // pred_check
          %p635 = pneg %p634
        $region83: #{gcn_forward.4} parent=72 // pred_check_branch
          %637 = sbr.rel (%p635) target = $region85
        $region84: #{gcn_forward.4} parent=72 // pred_region
          %v638 = vld [vmem:[#allocation2] sm:$0xff]
          %v639 = vld [vmem:[#allocation2 + $0x8] sm:$0xff]
          %v640 = vld [vmem:[#allocation2 + $0x10] sm:$0xff]
          %v641 = vld [vmem:[#allocation2 + $0x18] sm:$0xff]
          %v642 = vld [vmem:[#allocation2 + $0x20] sm:$0xff]
          %v643 = vld [vmem:[#allocation2 + $0x28] sm:$0xff]
          %v644 = vld [vmem:[#allocation2 + $0x30] sm:$0xff]
          %v645 = vld [vmem:[#allocation2 + $0x38] sm:$0xff]
          %v646 = vld [vmem:[#allocation2 + $0x40] sm:$0xff]
          %v647 = vld [vmem:[#allocation2 + $0x48] sm:$0xff]
          %v648 = vld [vmem:[#allocation2 + $0x50] sm:$0xff]
          %v649 = vld [vmem:[#allocation2 + $0x58] sm:$0xff]
          %v650 = vld [vmem:[#allocation2 + $0x60] sm:$0xff]
          %v651 = vld [vmem:[#allocation2 + $0x68] sm:$0xff]
          %v652 = vld [vmem:[#allocation2 + $0x70] sm:$0xff]
          %v653 = vld [vmem:[#allocation2 + $0x78] sm:$0xff]
          %v654 = vld [vmem:[%s2] sm:$0x1]
          %v656 = vlaneseq
          %v657 = vshrl.u32 %v656, 7
          %v658 = vsub.s32 0, %v657
          %v659 = vrot.slane %v654, %v658
          %v661 = vadd.f32 %v638, %v659
          %v662 = vadd.f32 %v639, %v659
          %v663 = vadd.f32 %v640, %v659
          %v664 = vadd.f32 %v641, %v659
          %v665 = vadd.f32 %v642, %v659
          %v666 = vadd.f32 %v643, %v659
          %v667 = vadd.f32 %v644, %v659
          %v668 = vadd.f32 %v645, %v659
          %v669 = vadd.f32 %v646, %v659
          %v670 = vadd.f32 %v647, %v659
          %v671 = vadd.f32 %v648, %v659
          %v672 = vadd.f32 %v649, %v659
          %v673 = vadd.f32 %v650, %v659
          %v674 = vadd.f32 %v651, %v659
          %v675 = vadd.f32 %v652, %v659
          %v676 = vadd.f32 %v653, %v659
          %v677 = vmax.f32 %v661, 0.0
          %v678 = vmax.f32 %v662, 0.0
          %v679 = vmax.f32 %v663, 0.0
          %v680 = vmax.f32 %v664, 0.0
          %v681 = vmax.f32 %v665, 0.0
          %v682 = vmax.f32 %v666, 0.0
          %v683 = vmax.f32 %v667, 0.0
          %v684 = vmax.f32 %v668, 0.0
          %v685 = vmax.f32 %v669, 0.0
          %v686 = vmax.f32 %v670, 0.0
          %v687 = vmax.f32 %v671, 0.0
          %v688 = vmax.f32 %v672, 0.0
          %v689 = vmax.f32 %v673, 0.0
          %v690 = vmax.f32 %v674, 0.0
          %v691 = vmax.f32 %v675, 0.0
          %v692 = vmax.f32 %v676, 0.0
          %v693 = vpack.c.bf16 %v678, %v677
          %v694 = vpack.c.bf16 %v680, %v679
          %v695 = vpack.c.bf16 %v682, %v681
          %v696 = vpack.c.bf16 %v684, %v683
          %v697 = vpack.c.bf16 %v686, %v685
          %v698 = vpack.c.bf16 %v688, %v687
          %v699 = vpack.c.bf16 %v690, %v689
          %v700 = vpack.c.bf16 %v692, %v691
          %v701 = vld [vmem:[%s3] sm:$0xf]
          %v702 = vld [vmem:[%s3 + $0x4] sm:$0xf]
          %v703 = vld [vmem:[%s3 + $0x8] sm:$0xf]
          %v704 = vld [vmem:[%s3 + $0xc] sm:$0xf]
          %v705 = vld [vmem:[%s3 + $0x10] sm:$0xf]
          %v706 = vld [vmem:[%s3 + $0x14] sm:$0xf]
          %v707 = vld [vmem:[%s3 + $0x18] sm:$0xf]
          %v708 = vld [vmem:[%s3 + $0x1c] sm:$0xf]
          %v709 = vld [vmem:[%s3 + $0x20] sm:$0xf]
          %v710 = vld [vmem:[%s3 + $0x24] sm:$0xf]
          %v711 = vld [vmem:[%s3 + $0x28] sm:$0xf]
          %v712 = vld [vmem:[%s3 + $0x2c] sm:$0xf]
          %v713 = vld [vmem:[%s3 + $0x30] sm:$0xf]
          %v714 = vld [vmem:[%s3 + $0x34] sm:$0xf]
          %v715 = vld [vmem:[%s3 + $0x38] sm:$0xf]
          %v716 = vld [vmem:[%s3 + $0x3c] sm:$0xf]
          %v733 = vunpack.c.l.b16 %v701
          %v734 = vunpack.c.l.b16 %v702
          %v735 = vunpack.c.l.b16 %v703
          %v736 = vunpack.c.l.b16 %v704
          %v737 = vunpack.c.l.b16 %v705
          %v738 = vunpack.c.l.b16 %v706
          %v739 = vunpack.c.l.b16 %v707
          %v740 = vunpack.c.l.b16 %v708
          %v741 = vunpack.c.l.b16 %v709
          %v742 = vunpack.c.l.b16 %v710
          %v743 = vunpack.c.l.b16 %v711
          %v744 = vunpack.c.l.b16 %v712
          %v745 = vunpack.c.l.b16 %v713
          %v746 = vunpack.c.l.b16 %v714
          %v747 = vunpack.c.l.b16 %v715
          %v748 = vunpack.c.l.b16 %v716
          %v749 = vpack.c.b16 %v734, %v733
          %v750 = vpack.c.b16 %v736, %v735
          %v751 = vpack.c.b16 %v738, %v737
          %v752 = vpack.c.b16 %v740, %v739
          %v753 = vpack.c.b16 %v742, %v741
          %v754 = vpack.c.b16 %v744, %v743
          %v755 = vpack.c.b16 %v746, %v745
          %v756 = vpack.c.b16 %v748, %v747
          %765 = vmatprep.subr.bf16.mxu0 0
          %766 = vmatpush1.bf16.msra.mxu0 %v749
          %767 = vmatprep.subr.bf16.mxu0 0
          %768 = vmatpush1.bf16.msra.mxu0 %v750
          %769 = vmatprep.subr.bf16.mxu0 0
          %770 = vmatpush1.bf16.msra.mxu0 %v751
          %771 = vmatprep.subr.bf16.mxu0 0
          %772 = vmatpush1.bf16.msra.mxu0 %v752
          %773 = vmatprep.subr.bf16.mxu0 0
          %774 = vmatpush1.bf16.msra.mxu0 %v753
          %775 = vmatprep.subr.bf16.mxu0 0
          %776 = vmatpush1.bf16.msra.mxu0 %v754
          %777 = vmatprep.subr.bf16.mxu0 0
          %778 = vmatpush1.bf16.msra.mxu0 %v755
          %779 = vmatprep.subr.bf16.mxu0 0
          %780 = vmatpush1.bf16.msra.mxu0 %v756
          %781 = vmatprep.subr.bf16.mxu0 0
          %782 = vmatpush1.bf16.msra.mxu0 0
          %783 = vmatprep.subr.bf16.mxu0 0
          %784 = vmatpush1.bf16.msra.mxu0 0
          %785 = vmatprep.subr.bf16.mxu0 0
          %786 = vmatpush1.bf16.msra.mxu0 0
          %787 = vmatprep.subr.bf16.mxu0 0
          %788 = vmatpush1.bf16.msra.mxu0 0
          %789 = vmatprep.subr.bf16.mxu0 0
          %790 = vmatpush1.bf16.msra.mxu0 0
          %791 = vmatprep.subr.bf16.mxu0 0
          %792 = vmatpush1.bf16.msra.mxu0 0
          %793 = vmatprep.subr.bf16.mxu0 0
          %794 = vmatpush1.bf16.msra.mxu0 0
          %795 = vmatprep.subr.bf16.mxu0 0
          %796 = vmatpush1.bf16.msra.mxu0 0
          %797 = vmatprep.mubr.bf16.mxu0 0
          %798 = vmatmul.mubr.bf16.gmra.mrb[0].mxu0 %v693
          %v799 = vpop.f32.mrb[0].mxu0
          %v800 = vadd.f32 0.0, %v799
          %v801 = vpop.f32.mrb[0].mxu0
          %v802 = vpop.f32.mrb[0].mxu0
          %v803 = vadd.f32 0.0, %v802
          %v804 = vpop.f32.mrb[0].mxu0
          %805 = vmatprep.mubr.bf16.mxu0 0
          %806 = vmatmul.mubr.bf16.gmra.mrb[0].mxu0 %v694
          %v807 = vpop.f32.mrb[0].mxu0
          %v808 = vadd.f32 0.0, %v807
          %v809 = vpop.f32.mrb[0].mxu0
          %v810 = vpop.f32.mrb[0].mxu0
          %v811 = vadd.f32 0.0, %v810
          %v812 = vpop.f32.mrb[0].mxu0
          %813 = vmatprep.mubr.bf16.mxu0 0
          %814 = vmatmul.mubr.bf16.gmra.mrb[0].mxu0 %v695
          %v815 = vpop.f32.mrb[0].mxu0
          %v816 = vadd.f32 0.0, %v815
          %v817 = vpop.f32.mrb[0].mxu0
          %v818 = vpop.f32.mrb[0].mxu0
          %v819 = vadd.f32 0.0, %v818
          %v820 = vpop.f32.mrb[0].mxu0
          %821 = vmatprep.mubr.bf16.mxu0 0
          %822 = vmatmul.mubr.bf16.gmra.mrb[0].mxu0 %v696
          %v823 = vpop.f32.mrb[0].mxu0
          %v824 = vadd.f32 0.0, %v823
          %v825 = vpop.f32.mrb[0].mxu0
          %v826 = vpop.f32.mrb[0].mxu0
          %v827 = vadd.f32 0.0, %v826
          %v828 = vpop.f32.mrb[0].mxu0
          %829 = vmatprep.mubr.bf16.mxu0 0
          %830 = vmatmul.mubr.bf16.gmra.mrb[0].mxu0 %v697
          %v831 = vpop.f32.mrb[0].mxu0
          %v832 = vadd.f32 0.0, %v831
          %v833 = vpop.f32.mrb[0].mxu0
          %v834 = vpop.f32.mrb[0].mxu0
          %v835 = vadd.f32 0.0, %v834
          %v836 = vpop.f32.mrb[0].mxu0
          %837 = vmatprep.mubr.bf16.mxu0 0
          %838 = vmatmul.mubr.bf16.gmra.mrb[0].mxu0 %v698
          %v839 = vpop.f32.mrb[0].mxu0
          %v840 = vadd.f32 0.0, %v839
          %v841 = vpop.f32.mrb[0].mxu0
          %v842 = vpop.f32.mrb[0].mxu0
          %v843 = vadd.f32 0.0, %v842
          %v844 = vpop.f32.mrb[0].mxu0
          %845 = vmatprep.mubr.bf16.mxu0 0
          %846 = vmatmul.mubr.bf16.gmra.mrb[0].mxu0 %v699
          %v847 = vpop.f32.mrb[0].mxu0
          %v848 = vadd.f32 0.0, %v847
          %v849 = vpop.f32.mrb[0].mxu0
          %v850 = vpop.f32.mrb[0].mxu0
          %v851 = vadd.f32 0.0, %v850
          %v852 = vpop.f32.mrb[0].mxu0
          %853 = vmatprep.mubr.bf16.mxu0 0
          %854 = vmatmul.mubr.bf16.gmra.mrb[0].mxu0 %v700
          %v855 = vpop.f32.mrb[0].mxu0
          %v856 = vadd.f32 0.0, %v855
          %v857 = vpop.f32.mrb[0].mxu0
          %v858 = vpop.f32.mrb[0].mxu0
          %v859 = vadd.f32 0.0, %v858
          %v860 = vpop.f32.mrb[0].mxu0
          %861 = vdwg.mxu0
          %v862 = vpack.c.bf16 %v803, %v800
          %v863 = vpack.c.bf16 %v811, %v808
          %v864 = vpack.c.bf16 %v819, %v816
          %v865 = vpack.c.bf16 %v827, %v824
          %v866 = vpack.c.bf16 %v835, %v832
          %v867 = vpack.c.bf16 %v843, %v840
          %v868 = vpack.c.bf16 %v851, %v848
          %v869 = vpack.c.bf16 %v859, %v856
          %v878 = vunpack.c.l.b16 %v862
          %v879 = vunpack.c.h.b16 %v862
          %v880 = vunpack.c.l.b16 %v863
          %v881 = vunpack.c.h.b16 %v863
          %v882 = vunpack.c.l.b16 %v864
          %v883 = vunpack.c.h.b16 %v864
          %v884 = vunpack.c.l.b16 %v865
          %v885 = vunpack.c.h.b16 %v865
          %v886 = vunpack.c.l.b16 %v866
          %v887 = vunpack.c.h.b16 %v866
          %v888 = vunpack.c.l.b16 %v867
          %v889 = vunpack.c.h.b16 %v867
          %v890 = vunpack.c.l.b16 %v868
          %v891 = vunpack.c.h.b16 %v868
          %v892 = vunpack.c.l.b16 %v869
          %v893 = vunpack.c.h.b16 %v869
          %v894 = vpack.c.b16 %v878, %v878
          %v895 = vpack.c.b16 %v879, %v879
          %v896 = vpack.c.b16 %v880, %v880
          %v897 = vpack.c.b16 %v881, %v881
          %v898 = vpack.c.b16 %v882, %v882
          %v899 = vpack.c.b16 %v883, %v883
          %v900 = vpack.c.b16 %v884, %v884
          %v901 = vpack.c.b16 %v885, %v885
          %v902 = vpack.c.b16 %v886, %v886
          %v903 = vpack.c.b16 %v887, %v887
          %v904 = vpack.c.b16 %v888, %v888
          %v905 = vpack.c.b16 %v889, %v889
          %v906 = vpack.c.b16 %v890, %v890
          %v907 = vpack.c.b16 %v891, %v891
          %v908 = vpack.c.b16 %v892, %v892
          %v909 = vpack.c.b16 %v893, %v893
          %926 = vst [vmem:[%s338] sm:$0xf] %v894
          %927 = vst [vmem:[%s338 + $0x4] sm:$0xf] %v895
          %928 = vst [vmem:[%s338 + $0x8] sm:$0xf] %v896
          %929 = vst [vmem:[%s338 + $0xc] sm:$0xf] %v897
          %930 = vst [vmem:[%s338 + $0x10] sm:$0xf] %v898
          %931 = vst [vmem:[%s338 + $0x14] sm:$0xf] %v899
          %932 = vst [vmem:[%s338 + $0x18] sm:$0xf] %v900
          %933 = vst [vmem:[%s338 + $0x1c] sm:$0xf] %v901
          %934 = vst [vmem:[%s338 + $0x20] sm:$0xf] %v902
          %935 = vst [vmem:[%s338 + $0x24] sm:$0xf] %v903
          %936 = vst [vmem:[%s338 + $0x28] sm:$0xf] %v904
          %937 = vst [vmem:[%s338 + $0x2c] sm:$0xf] %v905
          %938 = vst [vmem:[%s338 + $0x30] sm:$0xf] %v906
          %939 = vst [vmem:[%s338 + $0x34] sm:$0xf] %v907
          %940 = vst [vmem:[%s338 + $0x38] sm:$0xf] %v908
          %941 = vst [vmem:[%s338 + $0x3c] sm:$0xf] %v909
        $region85: #{gcn_forward.4} parent=72 // pred_fallthru
          _
        %s942 = smul.u32 16, %s19
        %p943 = scmp.lt.s32.totalorder %s942, 47
        %s944 = scalar_select %p943, %s942, 47
        %s945 = smul.addr %s944, 4
        %s946 = scalar_lea.vmem %s4, %s945
        // Predicated region
        $region86: #{gcn_forward.4} parent=72 // pred_check
          %p947 = pneg %p141
        $region87: #{gcn_forward.4} parent=72 // pred_check_branch
          %949 = sbr.rel (%p947) target = $region89
        $region88: #{gcn_forward.4} parent=72 // pred_region
          %s950 = smul.u32 16, %s19
        $region89: #{gcn_forward.4} parent=72 // pred_fallthru
          _
      $region73: #{gcn_forward.4} parent=5 // pred_fallthru
        _
      %p951 = scmp.le.s32.totalorder 2, %s10
      // Predicated region
      $region90: #{gcn_forward.4} parent=5 // pred_check
        %p952 = pneg %p951
      $region91: #{gcn_forward.4} parent=5 // pred_check_branch
        %954 = sbr.rel (%p952) target = $region93
      $region92: #{gcn_forward.4} parent=5 // pred_region
        %s955 = ssub.s32 %s10, 2
        // Predicated region
        $region94: #{gcn_forward.4} parent=92 // pred_check
          %p956 = pneg %p147
        $region95: #{gcn_forward.4} parent=92 // pred_check_branch
          %958 = sbr.rel (%p956) target = $region97
        $region96: #{gcn_forward.4} parent=92 // pred_region
          %s959 = smul.u32 16, %s21
          %p960 = scmp.lt.s32.totalorder %s959, 47
          %s961 = scalar_select %p960, %s959, 47
          %s962 = smul.addr %s961, 4
          %s963 = scalar_lea.vmem %s4, %s962
        $region97: #{gcn_forward.4} parent=92 // pred_fallthru
          _
      $region93: #{gcn_forward.4} parent=5 // pred_fallthru
        _
    $region6: #{gcn_forward.4} parent=1 // loop_footer
      %s14 = sadd.s32 1, %s10
    $region7: #{gcn_forward.4} parent=1 // loop_footer_branch
      %9 = sbr.rel target = $region3
    $region8: #{gcn_forward.4} parent=1 // loop_exit
      _

</llo_original>
